<compile_context>
chip_gen: v6e
topology: v6e:2x2x1
jax: 0.10.0
libtpu: 0.0.40
codegen_flags: <defaults>
</compile_context>

<pallas_src>
import functools

import jax
import jax.numpy as jnp
import numpy as np
from jax.experimental import pallas as pl
from jax.experimental.pallas import tpu as pltpu


# ----------------------------------------------------------------------------
# Pallas kernel: grid = (row tiles, K tiles).  The message-pass matmul is
# accumulated in f32 scratch over the K axis; the self-loop / skip / relu
# epilogue runs once per row tile at the last K step.
# ----------------------------------------------------------------------------
def _union_rgcn_layer_kernel(
    cat_ref,     # (TILE_N, TILE_K) bf16  [adj | typ] edge-count tile (stream)
    hsw_ref,     # (TILE_K, Fp)     bf16  ([h ; rel] @ W_neighbor) K-slab
    hmask_ref,   # (TILE_N, 2*Fp)   bf16  [mask*h | (1-mask)*h] row tile
    prev_ref,    # (TILE_N, Fp)     bf16  prev_h row tile
    norm_ref,    # (TILE_N, 1)      f32   per-dst norm (1/in_deg, 0 if none)
    wloop_ref,   # (2*Fp, Fp)       bf16  [loop_w ; evolve_loop_w] (resident)
    ws_ref,      # (Fp, Fp)         bf16  skip_connect_weight      (resident)
    bs_ref,      # (1, Fp)          f32   skip_connect_bias        (resident)
    out_ref,     # (TILE_N, Fp)     f32   output node_repr row tile
    acc_ref,     # (TILE_N, Fp)     f32   message-pass accumulator (scratch)
):
    k = pl.program_id(1)

    @pl.when(k == 0)
    def _():
        acc_ref[...] = jnp.zeros_like(acc_ref)

    # --- message passing: single fused matmul (W_neighbor already folded) ---
    acc_ref[...] += jnp.dot(cat_ref[...], hsw_ref[...],
                            preferred_element_type=jnp.float32)

    @pl.when(k == pl.num_programs(1) - 1)
    def _():
        # norm applied once, in f32, after the full K accumulation.
        msg = acc_ref[...] * norm_ref[...]

        # self-loop: [mask*h | (1-mask)*h] @ [loop_w ; evolve_loop_w]
        loop_msg = jnp.dot(hmask_ref[...], wloop_ref[...],
                           preferred_element_type=jnp.float32)

        # skip connection gate (f32 math, bf16-streamed prev_h).
        prev_f32 = prev_ref[...].astype(jnp.float32)
        skip_logit = jnp.dot(prev_ref[...], ws_ref[...],
                             preferred_element_type=jnp.float32) + bs_ref[...]
        sw = jax.nn.sigmoid(skip_logit)

        node_repr = sw * (msg + loop_msg) + (1.0 - sw) * prev_f32

        # relu; dropout = 0.0 is identity.
        out_ref[...] = jnp.maximum(node_repr, 0.0)


def _round_up(x, m):
    return (x + m - 1) // m * m


# ----------------------------------------------------------------------------
# Wrapper: pad to lane-dense layout, fuse/fold operands, grid over (rows, K).
# ----------------------------------------------------------------------------
@functools.partial(jax.jit, static_argnames=("tile_n", "tile_k", "vmem_cap"))
def union_rgcn_forward(adj_cnt, typ_cnt, h, rel, wn, wl, we, ws, bs,
                       prev_h, norm, indeg_mask, *,
                       tile_n=128, tile_k=512, vmem_cap=48 << 20):
    n, f = h.shape
    r = rel.shape[0]

    fp = _round_up(f, 128)                 # lane-dense feature dim
    npad = _round_up(n, tile_n)            # row-tileable node dim
    rp = _round_up(r, 128)                 # relation rows, lane-aligned
    kraw = npad + rp
    tile_k = min(tile_k, _round_up(kraw, 128))
    kpad = _round_up(kraw, tile_k)         # contraction dim, K-tileable

    def pad2(x, rows, cols):
        return jnp.pad(x, ((0, rows - x.shape[0]), (0, cols - x.shape[1])))

    # --- aggregation operands ------------------------------------------------
    # cat: exact integer edge counts (exact in bf16); norm applied in epilogue.
    cat = jnp.concatenate([pad2(adj_cnt, npad, npad),
                           pad2(typ_cnt, npad, rp)], axis=1)
    cat_bf = pad2(cat, npad, kpad).astype(jnp.bfloat16)          # (npad, kpad)

    # hs_w: W_neighbor folded once, in f32, into the stacked [h ; rel] operand.
    hs = jnp.concatenate([jnp.pad(h, ((0, npad - n), (0, 0))),
                          jnp.pad(rel, ((0, rp - r), (0, 0)))], axis=0)
    hs_w = jnp.dot(hs, wn)                                       # (npad+rp, f)
    hsw_bf = pad2(hs_w, kpad, fp).astype(jnp.bfloat16)           # (kpad, fp)

    # --- self-loop / skip operands -------------------------------------------
    h_p = pad2(h, npad, fp)
    mask_p = jnp.pad(indeg_mask, ((0, npad - n), (0, 0)))        # (npad, 1)
    hmask_bf = jnp.concatenate([h_p * mask_p, h_p * (1.0 - mask_p)],
                               axis=1).astype(jnp.bfloat16)      # (npad, 2fp)
    wloop_bf = jnp.concatenate([pad2(wl, fp, fp), pad2(we, fp, fp)],
                               axis=0).astype(jnp.bfloat16)      # (2fp, fp)

    prev_bf = pad2(prev_h, npad, fp).astype(jnp.bfloat16)        # (npad, fp)
    ws_bf = pad2(ws, fp, fp).astype(jnp.bfloat16)
    bs_p = pad2(bs, 1, fp)                                       # (1, fp) f32
    norm_p = jnp.pad(norm, ((0, npad - n), (0, 0)))              # (npad,1) f32

    grid = (npad // tile_n, kpad // tile_k)

    row = lambda i, k: (i, 0)        # streamed per destination-row tile
    kslab = lambda i, k: (k, 0)      # streamed per contraction tile
    fixed = lambda i, k: (0, 0)      # VMEM-resident across the grid

    in_specs = [
        # NOTE: raise to pipeline_mode=pl.Buffered(3) on the cat stream if
        # profiling shows exposed DMA and the VMEM budget allows it.
        pl.BlockSpec((tile_n, tile_k), lambda i, k: (i, k)),   # cat (dominant)
        pl.BlockSpec((tile_k, fp), kslab),                     # [h;rel]@Wn
        pl.BlockSpec((tile_n, 2 * fp), row),                   # hmask (bf16)
        pl.BlockSpec((tile_n, fp), row),                       # prev_h (bf16)
        pl.BlockSpec((tile_n, 1), row),                        # norm (f32)
        pl.BlockSpec((2 * fp, fp), fixed),                     # [wl ; we]
        pl.BlockSpec((fp, fp), fixed),                         # W_skip
        pl.BlockSpec((1, fp), fixed),                          # b_skip
    ]
    out_specs = pl.BlockSpec((tile_n, fp), row)

    # Advisory cost + shape-derived VMEM budget (double-buffered streams +
    # resident operands + headroom, capped per-generation by the caller).
    flops = 2 * npad * kpad * fp + 6 * npad * fp * fp
    transcendentals = npad * fp
    bytes_accessed = (cat_bf.size * 2 + hsw_bf.size * 2 + hmask_bf.size * 2
                      + prev_bf.size * 2 + norm_p.size * 4
                      + wloop_bf.size * 2 + ws_bf.size * 2 + bs_p.size * 4
                      + npad * fp * 4)
    stream_bytes = (tile_n * tile_k * 2 + tile_k * fp * 2
                    + tile_n * 2 * fp * 2 + tile_n * fp * 2
                    + tile_n * 4 + tile_n * fp * 4)
    resident_bytes = 2 * fp * fp * 2 + fp * fp * 2 + fp * 4 + tile_n * fp * 4
    vmem_limit = int(min(max(2 * stream_bytes + resident_bytes + (4 << 20),
                             24 << 20), vmem_cap))

    out = pl.pallas_call(
        _union_rgcn_layer_kernel,
        out_shape=jax.ShapeDtypeStruct((npad, fp), jnp.float32),
        grid_spec=pltpu.PrefetchScalarGridSpec(
            num_scalar_prefetch=0,
            grid=grid,
            in_specs=in_specs,
            out_specs=out_specs,
            scratch_shapes=[pltpu.VMEM((tile_n, fp), jnp.float32)]),
        compiler_params=pltpu.CompilerParams(
            dimension_semantics=("parallel", "arbitrary"),
            vmem_limit_bytes=vmem_limit),
        cost_estimate=pl.CostEstimate(
            flops=int(flops),
            transcendentals=int(transcendentals),
            bytes_accessed=int(bytes_accessed)),
    )(cat_bf, hsw_bf, hmask_bf, prev_bf, norm_p, wloop_bf, ws_bf, bs_p)

    return out[:n, :f]


# ----------------------------------------------------------------------------
# Generation-aware tile / VMEM selection (review items: tile_n=256 on
# v6e/v7x, 128 on v5e; ~100 MiB cap on v5e/v6e, 48 MiB on v7x).
# ----------------------------------------------------------------------------
def _device_config():
    kind = ""
    try:
        kind = jax.devices()[0].device_kind.lower()
    except Exception:
        pass
    if "v5" in kind:
        # v5e: 4x128^2 MXU already saturated at 128; 128 MiB physical VMEM.
        return dict(tile_n=128, tile_k=512, vmem_cap=100 << 20)
    if "v6" in kind:
        # v6e: 256-wide MXU; 128 MiB physical VMEM.
        return dict(tile_n=256, tile_k=512, vmem_cap=100 << 20)
    # v7x (64 MiB VMEM per TC) and unknown devices: conservative cap.
    return dict(tile_n=256, tile_k=512, vmem_cap=48 << 20)


# ----------------------------------------------------------------------------
# Parameter init (xavier_uniform, gain = calculate_gain('relu') = sqrt(2))
# ----------------------------------------------------------------------------
def xavier_uniform(key, shape, gain):
    fan_in, fan_out = shape[0], shape[1]
    bound = gain * np.sqrt(6.0 / (fan_in + fan_out))
    return jax.random.uniform(key, shape, jnp.float32, -bound, bound)


# ----------------------------------------------------------------------------
# Pure-JAX edge-wise f32 reference (mirrors msg_func / apply_func).
# ----------------------------------------------------------------------------
def reference_forward(src, dst, etype, h, rel, norm, wn, wl, we, ws, bs,
                      prev_h, in_deg):
    n, f = h.shape
    msg = jnp.dot(h[src] + rel[etype], wn)                 # (E, F)
    agg = jnp.zeros((n, f), jnp.float32).at[dst].add(msg)
    node_repr = agg * norm
    loop_msg = jnp.where(in_deg[:, None] > 0, jnp.dot(h, wl), jnp.dot(h, we))
    skip_w = jax.nn.sigmoid(jnp.dot(prev_h, ws) + bs)
    node_repr = node_repr + loop_msg
    node_repr = skip_w * node_repr + (1.0 - skip_w) * prev_h
    return jnp.maximum(node_repr, 0.0)


if __name__ == "__main__":
    # Small synthetic graph; N deliberately not a tile multiple to exercise
    # padding and (on v5e tiles) a multi-step row grid.
    N, E, R, F = 200, 512, 8, 32          # in_feat == out_feat == F
    gain = float(np.sqrt(2.0))

    key = jax.random.PRNGKey(0)
    keys = jax.random.split(key, 10)

    # Graph structure (deterministic).
    src = jax.random.randint(keys[0], (E,), 0, N)
    dst = jax.random.randint(keys[1], (E,), 0, N)
    etype = jax.random.randint(keys[2], (E,), 0, R)

    # Node / relation features.
    h = jax.random.normal(keys[3], (N, F), jnp.float32)
    rel_emb = jax.random.normal(keys[4], (R, F), jnp.float32)
    prev_h = jax.random.normal(keys[5], (N, F), jnp.float32)

    # Parameters (xavier_uniform, relu gain), bias zeros.
    w_neighbor = xavier_uniform(keys[6], (F, F), gain)
    loop_weight = xavier_uniform(keys[7], (F, F), gain)
    evolve_loop_weight = xavier_uniform(keys[8], (F, F), gain)
    skip_connect_weight = xavier_uniform(keys[9], (F, F), gain)
    skip_connect_bias = jnp.zeros((1, F), jnp.float32)

    # Dense aggregation operands: exact integer edge counts; norm kept as a
    # separate f32 vector (applied inside the kernel after the matmul).
    in_deg = jnp.zeros((N,), jnp.float32).at[dst].add(1.0)
    norm_vec = jnp.where(in_deg > 0, 1.0 / jnp.maximum(in_deg, 1.0), 0.0)
    adj_cnt = jnp.zeros((N, N), jnp.float32).at[dst, src].add(1.0)
    typ_cnt = jnp.zeros((N, R), jnp.float32).at[dst, etype].add(1.0)
    indeg_mask = (in_deg > 0).astype(jnp.float32)[:, None]

    cfg = _device_config()
    out = union_rgcn_forward(adj_cnt, typ_cnt, h, rel_emb,
                             w_neighbor, loop_weight, evolve_loop_weight,
                             skip_connect_weight, skip_connect_bias,
                             prev_h, norm_vec[:, None], indeg_mask, **cfg)
    out = jax.block_until_ready(out)

    ref = reference_forward(src, dst, etype, h, rel_emb, norm_vec[:, None],
                            w_neighbor, loop_weight, evolve_loop_weight,
                            skip_connect_weight, skip_connect_bias,
                            prev_h, in_deg)

    # Kernel uses bf16 MXU operands with f32 accumulation and f32 norm/blend
    # -> loosened tolerance vs the pure-f32 edge-wise reference.
    np.testing.assert_allclose(np.asarray(out), np.asarray(ref),
                               rtol=5e-2, atol=5e-2)
    print("KERNEL_OK")
</pallas_src>

<mosaic_0001>
module attributes {stable_mosaic.version = 11 : i64} {
  func.func @_union_rgcn_layer_kernel(%arg0: i32, %arg1: i32, %arg2: memref<256x384xbf16, #tpu.memory_space<vmem>>, %arg3: memref<384x128xbf16, #tpu.memory_space<vmem>>, %arg4: memref<256x256xbf16, #tpu.memory_space<vmem>>, %arg5: memref<256x128xbf16, #tpu.memory_space<vmem>>, %arg6: memref<256x1xf32, #tpu.memory_space<vmem>>, %arg7: memref<256x128xbf16, #tpu.memory_space<vmem>>, %arg8: memref<128x128xbf16, #tpu.memory_space<vmem>>, %arg9: memref<1x128xf32, #tpu.memory_space<vmem>>, %arg10: memref<256x128xf32, #tpu.memory_space<vmem>>, %arg11: memref<256x128xf32, #tpu.memory_space<vmem>>) attributes {dimension_semantics = [#tpu.dimension_semantics<parallel>, #tpu.dimension_semantics<arbitrary>], iteration_bounds = array<i64: 1, 1>, scalar_prefetch = 0 : i64, scratch_operands = 1 : i64, tpu.core_type = #tpu.core_type<tc>, window_params = [{transform_indices = @transform_0, window_bounds = array<i64: 256, 384>}, {transform_indices = @transform_1, window_bounds = array<i64: 384, 128>}, {transform_indices = @transform_2, window_bounds = array<i64: 256, 256>}, {transform_indices = @transform_3, window_bounds = array<i64: 256, 128>}, {transform_indices = @transform_4, window_bounds = array<i64: 256, 1>}, {pipeline_mode = #tpu.pipeline_mode<synchronous>, transform_indices = @transform_5, window_bounds = array<i64: 256, 128>}, {pipeline_mode = #tpu.pipeline_mode<synchronous>, transform_indices = @transform_6, window_bounds = array<i64: 128, 128>}, {pipeline_mode = #tpu.pipeline_mode<synchronous>, transform_indices = @transform_7, window_bounds = array<i64: 1, 128>}, {transform_indices = @transform_8, window_bounds = array<i64: 256, 128>}]} {
    %c0_i32 = arith.constant 0 : i32
    %0 = arith.cmpi eq, %arg1, %c0_i32 : i32
    %1 = arith.extui %0 : i1 to i32
    %c0_i32_0 = arith.constant 0 : i32
    %2 = arith.cmpi ne, %1, %c0_i32_0 : i32
    scf.if %2 {
      %cst_10 = arith.constant 0.000000e+00 : f32
      %12 = vector.broadcast %cst_10 : f32 to vector<256x128xf32>
      %c0_11 = arith.constant 0 : index
      %c0_12 = arith.constant 0 : index
      %13 = vector.load %arg11[%c0_11, %c0_12] : memref<256x128xf32, #tpu.memory_space<vmem>>, vector<256x128xf32>
      tpu.vector_store %arg11[%c0_11, %c0_12], %12 {strides = array<i32>} : memref<256x128xf32, #tpu.memory_space<vmem>>, vector<256x128xf32>,
    } else {
    }
    %c0 = arith.constant 0 : index
    %c0_1 = arith.constant 0 : index
    %3 = vector.load %arg11[%c0, %c0_1] : memref<256x128xf32, #tpu.memory_space<vmem>>, vector<256x128xf32>
    %c0_2 = arith.constant 0 : index
    %c0_3 = arith.constant 0 : index
    %4 = vector.load %arg2[%c0_2, %c0_3] : memref<256x384xbf16, #tpu.memory_space<vmem>>, vector<256x384xbf16>
    %c0_4 = arith.constant 0 : index
    %c0_5 = arith.constant 0 : index
    %5 = vector.load %arg3[%c0_4, %c0_5] : memref<384x128xbf16, #tpu.memory_space<vmem>>, vector<384x128xbf16>
    %cst = arith.constant dense<0.000000e+00> : vector<256x128xf32>
    %6 = tpu.matmul %4, %5, %cst {dimension_numbers = #tpu.dot_dimension_numbers<[1], [0], [0], [1], [0, 0, 1, 1], [], []>} : vector<256x384xbf16>, vector<384x128xbf16>, vector<256x128xf32> -> vector<256x128xf32>
    %7 = arith.addf %3, %6 : vector<256x128xf32>
    %c0_6 = arith.constant 0 : index
    %c0_7 = arith.constant 0 : index
    %8 = vector.load %arg11[%c0_6, %c0_7] : memref<256x128xf32, #tpu.memory_space<vmem>>, vector<256x128xf32>
    tpu.vector_store %arg11[%c0_6, %c0_7], %7 {strides = array<i32>} : memref<256x128xf32, #tpu.memory_space<vmem>>, vector<256x128xf32>,
    %c0_i32_8 = arith.constant 0 : i32
    %9 = arith.cmpi eq, %arg1, %c0_i32_8 : i32
    %10 = arith.extui %9 : i1 to i32
    %c0_i32_9 = arith.constant 0 : i32
    %11 = arith.cmpi ne, %10, %c0_i32_9 : i32
    scf.if %11 {
      %c0_10 = arith.constant 0 : index
      %c0_11 = arith.constant 0 : index
      %12 = vector.load %arg11[%c0_10, %c0_11] : memref<256x128xf32, #tpu.memory_space<vmem>>, vector<256x128xf32>
      %c0_12 = arith.constant 0 : index
      %c0_13 = arith.constant 0 : index
      %13 = vector.load %arg6[%c0_12, %c0_13] : memref<256x1xf32, #tpu.memory_space<vmem>>, vector<256x1xf32>
      %14 = vector.broadcast %13 : vector<256x1xf32> to vector<256x128xf32>
      %15 = arith.mulf %12, %14 : vector<256x128xf32>
      %c0_14 = arith.constant 0 : index
      %c0_15 = arith.constant 0 : index
      %16 = vector.load %arg4[%c0_14, %c0_15] : memref<256x256xbf16, #tpu.memory_space<vmem>>, vector<256x256xbf16>
      %c0_16 = arith.constant 0 : index
      %c0_17 = arith.constant 0 : index
      %17 = vector.load %arg7[%c0_16, %c0_17] : memref<256x128xbf16, #tpu.memory_space<vmem>>, vector<256x128xbf16>
      %cst_18 = arith.constant dense<0.000000e+00> : vector<256x128xf32>
      %18 = tpu.matmul %16, %17, %cst_18 {dimension_numbers = #tpu.dot_dimension_numbers<[1], [0], [0], [1], [0, 0, 1, 1], [], []>} : vector<256x256xbf16>, vector<256x128xbf16>, vector<256x128xf32> -> vector<256x128xf32>
      %c0_19 = arith.constant 0 : index
      %c0_20 = arith.constant 0 : index
      %19 = vector.load %arg5[%c0_19, %c0_20] : memref<256x128xbf16, #tpu.memory_space<vmem>>, vector<256x128xbf16>
      %20 = arith.extf %19 : vector<256x128xbf16> to vector<256x128xf32>
      %c0_21 = arith.constant 0 : index
      %c0_22 = arith.constant 0 : index
      %21 = vector.load %arg5[%c0_21, %c0_22] : memref<256x128xbf16, #tpu.memory_space<vmem>>, vector<256x128xbf16>
      %c0_23 = arith.constant 0 : index
      %c0_24 = arith.constant 0 : index
      %22 = vector.load %arg8[%c0_23, %c0_24] : memref<128x128xbf16, #tpu.memory_space<vmem>>, vector<128x128xbf16>
      %cst_25 = arith.constant dense<0.000000e+00> : vector<256x128xf32>
      %23 = tpu.matmul %21, %22, %cst_25 {dimension_numbers = #tpu.dot_dimension_numbers<[1], [0], [0], [1], [0, 0, 1, 1], [], []>} : vector<256x128xbf16>, vector<128x128xbf16>, vector<256x128xf32> -> vector<256x128xf32>
      %c0_26 = arith.constant 0 : index
      %c0_27 = arith.constant 0 : index
      %24 = vector.load %arg9[%c0_26, %c0_27] : memref<1x128xf32, #tpu.memory_space<vmem>>, vector<1x128xf32>
      %25 = vector.broadcast %24 : vector<1x128xf32> to vector<256x128xf32>
      %26 = arith.addf %23, %25 : vector<256x128xf32>
      %27 = arith.negf %26 : vector<256x128xf32>
      %28 = math.exp %27 : vector<256x128xf32>
      %cst_28 = arith.constant 1.000000e+00 : f32
      %29 = vector.broadcast %cst_28 : f32 to vector<256x128xf32>
      %30 = arith.addf %29, %28 : vector<256x128xf32>
      %31 = arith.divf %29, %30 : vector<256x128xf32>
      %32 = arith.addf %15, %18 : vector<256x128xf32>
      %33 = arith.mulf %31, %32 : vector<256x128xf32>
      %cst_29 = arith.constant 1.000000e+00 : f32
      %34 = vector.broadcast %cst_29 : f32 to vector<256x128xf32>
      %35 = arith.subf %34, %31 : vector<256x128xf32>
      %36 = arith.mulf %35, %20 : vector<256x128xf32>
      %37 = arith.addf %33, %36 : vector<256x128xf32>
      %cst_30 = arith.constant 0.000000e+00 : f32
      %38 = vector.broadcast %cst_30 : f32 to vector<256x128xf32>
      %39 = arith.maximumf %37, %38 : vector<256x128xf32>
      %c0_31 = arith.constant 0 : index
      %c0_32 = arith.constant 0 : index
      %40 = vector.load %arg10[%c0_31, %c0_32] : memref<256x128xf32, #tpu.memory_space<vmem>>, vector<256x128xf32>
      tpu.vector_store %arg10[%c0_31, %c0_32], %39 {strides = array<i32>} : memref<256x128xf32, #tpu.memory_space<vmem>>, vector<256x128xf32>,
    } else {
    }
    return
  }
  func.func @transform_0(%arg0: i32, %arg1: i32) -> (i32, i32) {
    %c0_i32 = arith.constant 0 : i32
    return %arg0, %arg1 : i32, i32
  }
  func.func @transform_1(%arg0: i32, %arg1: i32) -> (i32, i32) {
    %c0_i32 = arith.constant 0 : i32
    %c0_i32_0 = arith.constant 0 : i32
    return %arg1, %c0_i32 : i32, i32
  }
  func.func @transform_2(%arg0: i32, %arg1: i32) -> (i32, i32) {
    %c0_i32 = arith.constant 0 : i32
    %c0_i32_0 = arith.constant 0 : i32
    return %arg0, %c0_i32 : i32, i32
  }
  func.func @transform_3(%arg0: i32, %arg1: i32) -> (i32, i32) {
    %c0_i32 = arith.constant 0 : i32
    %c0_i32_0 = arith.constant 0 : i32
    return %arg0, %c0_i32 : i32, i32
  }
  func.func @transform_4(%arg0: i32, %arg1: i32) -> (i32, i32) {
    %c0_i32 = arith.constant 0 : i32
    %c0_i32_0 = arith.constant 0 : i32
    return %arg0, %c0_i32 : i32, i32
  }
  func.func @transform_5(%arg0: i32, %arg1: i32) -> (i32, i32) {
    %c0_i32 = arith.constant 0 : i32
    %c0_i32_0 = arith.constant 0 : i32
    %c0_i32_1 = arith.constant 0 : i32
    return %c0_i32, %c0_i32_0 : i32, i32
  }
  func.func @transform_6(%arg0: i32, %arg1: i32) -> (i32, i32) {
    %c0_i32 = arith.constant 0 : i32
    %c0_i32_0 = arith.constant 0 : i32
    %c0_i32_1 = arith.constant 0 : i32
    return %c0_i32, %c0_i32_0 : i32, i32
  }
  func.func @transform_7(%arg0: i32, %arg1: i32) -> (i32, i32) {
    %c0_i32 = arith.constant 0 : i32
    %c0_i32_0 = arith.constant 0 : i32
    %c0_i32_1 = arith.constant 0 : i32
    return %c0_i32, %c0_i32_0 : i32, i32
  }
  func.func @transform_8(%arg0: i32, %arg1: i32) -> (i32, i32) {
    %c0_i32 = arith.constant 0 : i32
    %c0_i32_0 = arith.constant 0 : i32
    return %arg0, %c0_i32 : i32, i32
  }
}

</mosaic_0001>

<llo_original>
// kernel: union_rgcn_forward.1
$region0: #{union_rgcn_forward.1}
  #allocation0 [shape = 'u32[]', space=smem, size = 0x4, offset = 0x4, fixed_abs, tag = 'smem constant byte address 0x4 - core index']
  #allocation1 [shape = 'u32[144,128]{1,0:T(1,128)}', space=vmem, size = 0x12000, scoped, tag = 'internal scratch']
  #allocation2 [shape = 'f32[256,128]{1,0:T(8,128)}', space=vmem, size = 0x20000, scoped, tag = 'scratch operand']
  %s0 = inlined_call_operand.vmem [shape: bf16[256,384], index: 0, kind: input, shape index: {}]
  %s1 = inlined_call_operand.vmem [shape: bf16[384,128], index: 1, kind: input, shape index: {}]
  %s2 = inlined_call_operand.vmem [shape: bf16[256,256], index: 2, kind: input, shape index: {}]
  %s3 = inlined_call_operand.vmem [shape: bf16[256,128], index: 3, kind: input, shape index: {}]
  %s4 = inlined_call_operand.vmem [shape: f32[256,1], index: 4, kind: input, shape index: {}]
  %s5 = inlined_call_operand.vmem [shape: bf16[256,128], index: 5, kind: input, shape index: {}]
  %s6 = inlined_call_operand.vmem [shape: bf16[128,128], index: 6, kind: input, shape index: {}]
  %s7 = inlined_call_operand.vmem [shape: f32[1,128], index: 7, kind: input, shape index: {}]
  %s8 = inlined_call_operand.vmem [shape: f32[256,128], index: 8, kind: output, shape index: {}]
  %s9 = sld [smem:[#allocation0]]
  $region50: #{union_rgcn_forward.1} parent=0
    _
  %s11 = ssub.s32 1, %s9
  %s12 = scalar_select 0, %s11, %s9
  // Predicated region
  $region2: #{union_rgcn_forward.1} parent=0 // pred_check
    _
  $region3: #{union_rgcn_forward.1} parent=0 // pred_check_branch
    %14 = sbr.rel (0) target = $region5
  $region4: #{union_rgcn_forward.1} parent=0 // pred_region
    _
  $region5: #{union_rgcn_forward.1} parent=0 // pred_fallthru
    _
  // Predicated region
  $region6: #{union_rgcn_forward.1} parent=0 // pred_check
    _
  $region7: #{union_rgcn_forward.1} parent=0 // pred_check_branch
    %16 = sbr.rel (0) target = $region9
  $region8: #{union_rgcn_forward.1} parent=0 // pred_region
    _
  $region9: #{union_rgcn_forward.1} parent=0 // pred_fallthru
    _
  // Predicated region
  $region10: #{union_rgcn_forward.1} parent=0 // pred_check
    _
  $region11: #{union_rgcn_forward.1} parent=0 // pred_check_branch
    %18 = sbr.rel (0) target = $region13
  $region12: #{union_rgcn_forward.1} parent=0 // pred_region
    _
  $region13: #{union_rgcn_forward.1} parent=0 // pred_fallthru
    _
  // Predicated region
  $region14: #{union_rgcn_forward.1} parent=0 // pred_check
    _
  $region15: #{union_rgcn_forward.1} parent=0 // pred_check_branch
    %20 = sbr.rel (0) target = $region17
  $region16: #{union_rgcn_forward.1} parent=0 // pred_region
    _
  $region17: #{union_rgcn_forward.1} parent=0 // pred_fallthru
    _
  // Predicated region
  $region18: #{union_rgcn_forward.1} parent=0 // pred_check
    _
  $region19: #{union_rgcn_forward.1} parent=0 // pred_check_branch
    %22 = sbr.rel (0) target = $region21
  $region20: #{union_rgcn_forward.1} parent=0 // pred_region
    _
  $region21: #{union_rgcn_forward.1} parent=0 // pred_fallthru
    _
  // Predicated region
  $region22: #{union_rgcn_forward.1} parent=0 // pred_check
    _
  $region23: #{union_rgcn_forward.1} parent=0 // pred_check_branch
    %24 = sbr.rel (0) target = $region25
  $region24: #{union_rgcn_forward.1} parent=0 // pred_region
    _
  $region25: #{union_rgcn_forward.1} parent=0 // pred_fallthru
    _
  // Predicated region
  $region26: #{union_rgcn_forward.1} parent=0 // pred_check
    _
  $region27: #{union_rgcn_forward.1} parent=0 // pred_check_branch
    %26 = sbr.rel (0) target = $region29
  $region28: #{union_rgcn_forward.1} parent=0 // pred_region
    _
  $region29: #{union_rgcn_forward.1} parent=0 // pred_fallthru
    _
  // Predicated region
  $region30: #{union_rgcn_forward.1} parent=0 // pred_check
    _
  $region31: #{union_rgcn_forward.1} parent=0 // pred_check_branch
    %28 = sbr.rel (0) target = $region33
  $region32: #{union_rgcn_forward.1} parent=0 // pred_region
    _
  $region33: #{union_rgcn_forward.1} parent=0 // pred_fallthru
    _
  %p30 = scmp.eq.s32.totalorder 0, 0
  // Predicated region
  $region34: #{union_rgcn_forward.1} parent=0 // pred_check
    %p31 = pneg %p30
  $region35: #{union_rgcn_forward.1} parent=0 // pred_check_branch
    %33 = sbr.rel (%p31) target = $region37
  $region36: #{union_rgcn_forward.1} parent=0 // pred_region
    %34 = vst [vmem:[#allocation2] sm:$0xff] 0.0
    %35 = vst [vmem:[#allocation2 + $0x8] sm:$0xff] 0.0
    %36 = vst [vmem:[#allocation2 + $0x10] sm:$0xff] 0.0
    %37 = vst [vmem:[#allocation2 + $0x18] sm:$0xff] 0.0
    %38 = vst [vmem:[#allocation2 + $0x20] sm:$0xff] 0.0
    %39 = vst [vmem:[#allocation2 + $0x28] sm:$0xff] 0.0
    %40 = vst [vmem:[#allocation2 + $0x30] sm:$0xff] 0.0
    %41 = vst [vmem:[#allocation2 + $0x38] sm:$0xff] 0.0
    %42 = vst [vmem:[#allocation2 + $0x40] sm:$0xff] 0.0
    %43 = vst [vmem:[#allocation2 + $0x48] sm:$0xff] 0.0
    %44 = vst [vmem:[#allocation2 + $0x50] sm:$0xff] 0.0
    %45 = vst [vmem:[#allocation2 + $0x58] sm:$0xff] 0.0
    %46 = vst [vmem:[#allocation2 + $0x60] sm:$0xff] 0.0
    %47 = vst [vmem:[#allocation2 + $0x68] sm:$0xff] 0.0
    %48 = vst [vmem:[#allocation2 + $0x70] sm:$0xff] 0.0
    %49 = vst [vmem:[#allocation2 + $0x78] sm:$0xff] 0.0
    %50 = vst [vmem:[#allocation2 + $0x80] sm:$0xff] 0.0
    %51 = vst [vmem:[#allocation2 + $0x88] sm:$0xff] 0.0
    %52 = vst [vmem:[#allocation2 + $0x90] sm:$0xff] 0.0
    %53 = vst [vmem:[#allocation2 + $0x98] sm:$0xff] 0.0
    %54 = vst [vmem:[#allocation2 + $0xa0] sm:$0xff] 0.0
    %55 = vst [vmem:[#allocation2 + $0xa8] sm:$0xff] 0.0
    %56 = vst [vmem:[#allocation2 + $0xb0] sm:$0xff] 0.0
    %57 = vst [vmem:[#allocation2 + $0xb8] sm:$0xff] 0.0
    %58 = vst [vmem:[#allocation2 + $0xc0] sm:$0xff] 0.0
    %59 = vst [vmem:[#allocation2 + $0xc8] sm:$0xff] 0.0
    %60 = vst [vmem:[#allocation2 + $0xd0] sm:$0xff] 0.0
    %61 = vst [vmem:[#allocation2 + $0xd8] sm:$0xff] 0.0
    %62 = vst [vmem:[#allocation2 + $0xe0] sm:$0xff] 0.0
    %63 = vst [vmem:[#allocation2 + $0xe8] sm:$0xff] 0.0
    %64 = vst [vmem:[#allocation2 + $0xf0] sm:$0xff] 0.0
    %65 = vst [vmem:[#allocation2 + $0xf8] sm:$0xff] 0.0
  $region37: #{union_rgcn_forward.1} parent=0 // pred_fallthru
    _
  %v66 = vld [vmem:[#allocation2] sm:$0xff]
  %v67 = vld [vmem:[#allocation2 + $0x8] sm:$0xff]
  %v68 = vld [vmem:[#allocation2 + $0x10] sm:$0xff]
  %v69 = vld [vmem:[#allocation2 + $0x18] sm:$0xff]
  %v70 = vld [vmem:[#allocation2 + $0x20] sm:$0xff]
  %v71 = vld [vmem:[#allocation2 + $0x28] sm:$0xff]
  %v72 = vld [vmem:[#allocation2 + $0x30] sm:$0xff]
  %v73 = vld [vmem:[#allocation2 + $0x38] sm:$0xff]
  %v74 = vld [vmem:[#allocation2 + $0x40] sm:$0xff]
  %v75 = vld [vmem:[#allocation2 + $0x48] sm:$0xff]
  %v76 = vld [vmem:[#allocation2 + $0x50] sm:$0xff]
  %v77 = vld [vmem:[#allocation2 + $0x58] sm:$0xff]
  %v78 = vld [vmem:[#allocation2 + $0x60] sm:$0xff]
  %v79 = vld [vmem:[#allocation2 + $0x68] sm:$0xff]
  %v80 = vld [vmem:[#allocation2 + $0x70] sm:$0xff]
  %v81 = vld [vmem:[#allocation2 + $0x78] sm:$0xff]
  %v82 = vld [vmem:[#allocation2 + $0x80] sm:$0xff]
  %v83 = vld [vmem:[#allocation2 + $0x88] sm:$0xff]
  %v84 = vld [vmem:[#allocation2 + $0x90] sm:$0xff]
  %v85 = vld [vmem:[#allocation2 + $0x98] sm:$0xff]
  %v86 = vld [vmem:[#allocation2 + $0xa0] sm:$0xff]
  %v87 = vld [vmem:[#allocation2 + $0xa8] sm:$0xff]
  %v88 = vld [vmem:[#allocation2 + $0xb0] sm:$0xff]
  %v89 = vld [vmem:[#allocation2 + $0xb8] sm:$0xff]
  %v90 = vld [vmem:[#allocation2 + $0xc0] sm:$0xff]
  %v91 = vld [vmem:[#allocation2 + $0xc8] sm:$0xff]
  %v92 = vld [vmem:[#allocation2 + $0xd0] sm:$0xff]
  %v93 = vld [vmem:[#allocation2 + $0xd8] sm:$0xff]
  %v94 = vld [vmem:[#allocation2 + $0xe0] sm:$0xff]
  %v95 = vld [vmem:[#allocation2 + $0xe8] sm:$0xff]
  %v96 = vld [vmem:[#allocation2 + $0xf0] sm:$0xff]
  %v97 = vld [vmem:[#allocation2 + $0xf8] sm:$0xff]
  %v98 = vld [vmem:[%s0] sm:$0xff]
  %v99 = vld [vmem:[%s0 + $0x8] sm:$0xf]
  %v100 = vld [vmem:[%s0 + $0xc] sm:$0xff]
  %v101 = vld [vmem:[%s0 + $0x14] sm:$0xf]
  %v102 = vld [vmem:[%s0 + $0x18] sm:$0xff]
  %v103 = vld [vmem:[%s0 + $0x20] sm:$0xf]
  %v104 = vld [vmem:[%s0 + $0x24] sm:$0xff]
  %v105 = vld [vmem:[%s0 + $0x2c] sm:$0xf]
  %v106 = vld [vmem:[%s0 + $0x30] sm:$0xff]
  %v107 = vld [vmem:[%s0 + $0x38] sm:$0xf]
  %v108 = vld [vmem:[%s0 + $0x3c] sm:$0xff]
  %v109 = vld [vmem:[%s0 + $0x44] sm:$0xf]
  %v110 = vld [vmem:[%s0 + $0x48] sm:$0xff]
  %v111 = vld [vmem:[%s0 + $0x50] sm:$0xf]
  %v112 = vld [vmem:[%s0 + $0x54] sm:$0xff]
  %v113 = vld [vmem:[%s0 + $0x5c] sm:$0xf]
  %v114 = vld [vmem:[%s0 + $0x60] sm:$0xff]
  %v115 = vld [vmem:[%s0 + $0x68] sm:$0xf]
  %v116 = vld [vmem:[%s0 + $0x6c] sm:$0xff]
  %v117 = vld [vmem:[%s0 + $0x74] sm:$0xf]
  %v118 = vld [vmem:[%s0 + $0x78] sm:$0xff]
  %v119 = vld [vmem:[%s0 + $0x80] sm:$0xf]
  %v120 = vld [vmem:[%s0 + $0x84] sm:$0xff]
  %v121 = vld [vmem:[%s0 + $0x8c] sm:$0xf]
  %v122 = vld [vmem:[%s0 + $0x90] sm:$0xff]
  %v123 = vld [vmem:[%s0 + $0x98] sm:$0xf]
  %v124 = vld [vmem:[%s0 + $0x9c] sm:$0xff]
  %v125 = vld [vmem:[%s0 + $0xa4] sm:$0xf]
  %v126 = vld [vmem:[%s0 + $0xa8] sm:$0xff]
  %v127 = vld [vmem:[%s0 + $0xb0] sm:$0xf]
  %v128 = vld [vmem:[%s0 + $0xb4] sm:$0xff]
  %v129 = vld [vmem:[%s0 + $0xbc] sm:$0xf]
  %v130 = vld [vmem:[%s0 + $0xc0] sm:$0xff]
  %v131 = vld [vmem:[%s0 + $0xc8] sm:$0xf]
  %v132 = vld [vmem:[%s0 + $0xcc] sm:$0xff]
  %v133 = vld [vmem:[%s0 + $0xd4] sm:$0xf]
  %v134 = vld [vmem:[%s0 + $0xd8] sm:$0xff]
  %v135 = vld [vmem:[%s0 + $0xe0] sm:$0xf]
  %v136 = vld [vmem:[%s0 + $0xe4] sm:$0xff]
  %v137 = vld [vmem:[%s0 + $0xec] sm:$0xf]
  %v138 = vld [vmem:[%s0 + $0xf0] sm:$0xff]
  %v139 = vld [vmem:[%s0 + $0xf8] sm:$0xf]
  %v140 = vld [vmem:[%s0 + $0xfc] sm:$0xff]
  %v141 = vld [vmem:[%s0 + $0x104] sm:$0xf]
  %v142 = vld [vmem:[%s0 + $0x108] sm:$0xff]
  %v143 = vld [vmem:[%s0 + $0x110] sm:$0xf]
  %v144 = vld [vmem:[%s0 + $0x114] sm:$0xff]
  %v145 = vld [vmem:[%s0 + $0x11c] sm:$0xf]
  %v146 = vld [vmem:[%s0 + $0x120] sm:$0xff]
  %v147 = vld [vmem:[%s0 + $0x128] sm:$0xf]
  %v148 = vld [vmem:[%s0 + $0x12c] sm:$0xff]
  %v149 = vld [vmem:[%s0 + $0x134] sm:$0xf]
  %v150 = vld [vmem:[%s0 + $0x138] sm:$0xff]
  %v151 = vld [vmem:[%s0 + $0x140] sm:$0xf]
  %v152 = vld [vmem:[%s0 + $0x144] sm:$0xff]
  %v153 = vld [vmem:[%s0 + $0x14c] sm:$0xf]
  %v154 = vld [vmem:[%s0 + $0x150] sm:$0xff]
  %v155 = vld [vmem:[%s0 + $0x158] sm:$0xf]
  %v156 = vld [vmem:[%s0 + $0x15c] sm:$0xff]
  %v157 = vld [vmem:[%s0 + $0x164] sm:$0xf]
  %v158 = vld [vmem:[%s0 + $0x168] sm:$0xff]
  %v159 = vld [vmem:[%s0 + $0x170] sm:$0xf]
  %v160 = vld [vmem:[%s0 + $0x174] sm:$0xff]
  %v161 = vld [vmem:[%s0 + $0x17c] sm:$0xf]
  %v162 = vld [vmem:[%s1] sm:$0xf]
  %v163 = vld [vmem:[%s1 + $0x4] sm:$0xf]
  %v164 = vld [vmem:[%s1 + $0x8] sm:$0xf]
  %v165 = vld [vmem:[%s1 + $0xc] sm:$0xf]
  %v166 = vld [vmem:[%s1 + $0x10] sm:$0xf]
  %v167 = vld [vmem:[%s1 + $0x14] sm:$0xf]
  %v168 = vld [vmem:[%s1 + $0x18] sm:$0xf]
  %v169 = vld [vmem:[%s1 + $0x1c] sm:$0xf]
  %v170 = vld [vmem:[%s1 + $0x20] sm:$0xf]
  %v171 = vld [vmem:[%s1 + $0x24] sm:$0xf]
  %v172 = vld [vmem:[%s1 + $0x28] sm:$0xf]
  %v173 = vld [vmem:[%s1 + $0x2c] sm:$0xf]
  %v174 = vld [vmem:[%s1 + $0x30] sm:$0xf]
  %v175 = vld [vmem:[%s1 + $0x34] sm:$0xf]
  %v176 = vld [vmem:[%s1 + $0x38] sm:$0xf]
  %v177 = vld [vmem:[%s1 + $0x3c] sm:$0xf]
  %v178 = vld [vmem:[%s1 + $0x40] sm:$0xf]
  %v179 = vld [vmem:[%s1 + $0x44] sm:$0xf]
  %v180 = vld [vmem:[%s1 + $0x48] sm:$0xf]
  %v181 = vld [vmem:[%s1 + $0x4c] sm:$0xf]
  %v182 = vld [vmem:[%s1 + $0x50] sm:$0xf]
  %v183 = vld [vmem:[%s1 + $0x54] sm:$0xf]
  %v184 = vld [vmem:[%s1 + $0x58] sm:$0xf]
  %v185 = vld [vmem:[%s1 + $0x5c] sm:$0xf]
  %v186 = vld [vmem:[%s1 + $0x60] sm:$0xf]
  %v187 = vld [vmem:[%s1 + $0x64] sm:$0xf]
  %v188 = vld [vmem:[%s1 + $0x68] sm:$0xf]
  %v189 = vld [vmem:[%s1 + $0x6c] sm:$0xf]
  %v190 = vld [vmem:[%s1 + $0x70] sm:$0xf]
  %v191 = vld [vmem:[%s1 + $0x74] sm:$0xf]
  %v192 = vld [vmem:[%s1 + $0x78] sm:$0xf]
  %v193 = vld [vmem:[%s1 + $0x7c] sm:$0xf]
  %v194 = vld [vmem:[%s1 + $0x80] sm:$0xf]
  %v195 = vld [vmem:[%s1 + $0x84] sm:$0xf]
  %v196 = vld [vmem:[%s1 + $0x88] sm:$0xf]
  %v197 = vld [vmem:[%s1 + $0x8c] sm:$0xf]
  %v198 = vld [vmem:[%s1 + $0x90] sm:$0xf]
  %v199 = vld [vmem:[%s1 + $0x94] sm:$0xf]
  %v200 = vld [vmem:[%s1 + $0x98] sm:$0xf]
  %v201 = vld [vmem:[%s1 + $0x9c] sm:$0xf]
  %v202 = vld [vmem:[%s1 + $0xa0] sm:$0xf]
  %v203 = vld [vmem:[%s1 + $0xa4] sm:$0xf]
  %v204 = vld [vmem:[%s1 + $0xa8] sm:$0xf]
  %v205 = vld [vmem:[%s1 + $0xac] sm:$0xf]
  %v206 = vld [vmem:[%s1 + $0xb0] sm:$0xf]
  %v207 = vld [vmem:[%s1 + $0xb4] sm:$0xf]
  %v208 = vld [vmem:[%s1 + $0xb8] sm:$0xf]
  %v209 = vld [vmem:[%s1 + $0xbc] sm:$0xf]
  %v274 = vunpack.c.l.b16 %v98
  %v275 = vunpack.c.h.b16 %v98
  %v276 = vunpack.c.l.b16 %v99
  %v277 = vunpack.c.l.b16 %v100
  %v278 = vunpack.c.h.b16 %v100
  %v279 = vunpack.c.l.b16 %v101
  %v280 = vunpack.c.l.b16 %v102
  %v281 = vunpack.c.h.b16 %v102
  %v282 = vunpack.c.l.b16 %v103
  %v283 = vunpack.c.l.b16 %v104
  %v284 = vunpack.c.h.b16 %v104
  %v285 = vunpack.c.l.b16 %v105
  %v286 = vunpack.c.l.b16 %v106
  %v287 = vunpack.c.h.b16 %v106
  %v288 = vunpack.c.l.b16 %v107
  %v289 = vunpack.c.l.b16 %v108
  %v290 = vunpack.c.h.b16 %v108
  %v291 = vunpack.c.l.b16 %v109
  %v292 = vunpack.c.l.b16 %v110
  %v293 = vunpack.c.h.b16 %v110
  %v294 = vunpack.c.l.b16 %v111
  %v295 = vunpack.c.l.b16 %v112
  %v296 = vunpack.c.h.b16 %v112
  %v297 = vunpack.c.l.b16 %v113
  %v298 = vunpack.c.l.b16 %v114
  %v299 = vunpack.c.h.b16 %v114
  %v300 = vunpack.c.l.b16 %v115
  %v301 = vunpack.c.l.b16 %v116
  %v302 = vunpack.c.h.b16 %v116
  %v303 = vunpack.c.l.b16 %v117
  %v304 = vunpack.c.l.b16 %v118
  %v305 = vunpack.c.h.b16 %v118
  %v306 = vunpack.c.l.b16 %v119
  %v307 = vunpack.c.l.b16 %v120
  %v308 = vunpack.c.h.b16 %v120
  %v309 = vunpack.c.l.b16 %v121
  %v310 = vunpack.c.l.b16 %v122
  %v311 = vunpack.c.h.b16 %v122
  %v312 = vunpack.c.l.b16 %v123
  %v313 = vunpack.c.l.b16 %v124
  %v314 = vunpack.c.h.b16 %v124
  %v315 = vunpack.c.l.b16 %v125
  %v316 = vunpack.c.l.b16 %v126
  %v317 = vunpack.c.h.b16 %v126
  %v318 = vunpack.c.l.b16 %v127
  %v319 = vunpack.c.l.b16 %v128
  %v320 = vunpack.c.h.b16 %v128
  %v321 = vunpack.c.l.b16 %v129
  %v322 = vunpack.c.l.b16 %v130
  %v323 = vunpack.c.h.b16 %v130
  %v324 = vunpack.c.l.b16 %v131
  %v325 = vunpack.c.l.b16 %v132
  %v326 = vunpack.c.h.b16 %v132
  %v327 = vunpack.c.l.b16 %v133
  %v328 = vunpack.c.l.b16 %v134
  %v329 = vunpack.c.h.b16 %v134
  %v330 = vunpack.c.l.b16 %v135
  %v331 = vunpack.c.l.b16 %v136
  %v332 = vunpack.c.h.b16 %v136
  %v333 = vunpack.c.l.b16 %v137
  %v334 = vunpack.c.l.b16 %v138
  %v335 = vunpack.c.h.b16 %v138
  %v336 = vunpack.c.l.b16 %v139
  %v337 = vunpack.c.l.b16 %v140
  %v338 = vunpack.c.h.b16 %v140
  %v339 = vunpack.c.l.b16 %v141
  %v340 = vunpack.c.l.b16 %v142
  %v341 = vunpack.c.h.b16 %v142
  %v342 = vunpack.c.l.b16 %v143
  %v343 = vunpack.c.l.b16 %v144
  %v344 = vunpack.c.h.b16 %v144
  %v345 = vunpack.c.l.b16 %v145
  %v346 = vunpack.c.l.b16 %v146
  %v347 = vunpack.c.h.b16 %v146
  %v348 = vunpack.c.l.b16 %v147
  %v349 = vunpack.c.l.b16 %v148
  %v350 = vunpack.c.h.b16 %v148
  %v351 = vunpack.c.l.b16 %v149
  %v352 = vunpack.c.l.b16 %v150
  %v353 = vunpack.c.h.b16 %v150
  %v354 = vunpack.c.l.b16 %v151
  %v355 = vunpack.c.l.b16 %v152
  %v356 = vunpack.c.h.b16 %v152
  %v357 = vunpack.c.l.b16 %v153
  %v358 = vunpack.c.l.b16 %v154
  %v359 = vunpack.c.h.b16 %v154
  %v360 = vunpack.c.l.b16 %v155
  %v361 = vunpack.c.l.b16 %v156
  %v362 = vunpack.c.h.b16 %v156
  %v363 = vunpack.c.l.b16 %v157
  %v364 = vunpack.c.l.b16 %v158
  %v365 = vunpack.c.h.b16 %v158
  %v366 = vunpack.c.l.b16 %v159
  %v367 = vunpack.c.l.b16 %v160
  %v368 = vunpack.c.h.b16 %v160
  %v369 = vunpack.c.l.b16 %v161
  %v370 = vpack.c.b16 %v277, %v274
  %v371 = vpack.c.b16 %v278, %v275
  %v372 = vpack.c.b16 %v279, %v276
  %v373 = vpack.c.b16 %v283, %v280
  %v374 = vpack.c.b16 %v284, %v281
  %v375 = vpack.c.b16 %v285, %v282
  %v376 = vpack.c.b16 %v289, %v286
  %v377 = vpack.c.b16 %v290, %v287
  %v378 = vpack.c.b16 %v291, %v288
  %v379 = vpack.c.b16 %v295, %v292
  %v380 = vpack.c.b16 %v296, %v293
  %v381 = vpack.c.b16 %v297, %v294
  %v382 = vpack.c.b16 %v301, %v298
  %v383 = vpack.c.b16 %v302, %v299
  %v384 = vpack.c.b16 %v303, %v300
  %v385 = vpack.c.b16 %v307, %v304
  %v386 = vpack.c.b16 %v308, %v305
  %v387 = vpack.c.b16 %v309, %v306
  %v388 = vpack.c.b16 %v313, %v310
  %v389 = vpack.c.b16 %v314, %v311
  %v390 = vpack.c.b16 %v315, %v312
  %v391 = vpack.c.b16 %v319, %v316
  %v392 = vpack.c.b16 %v320, %v317
  %v393 = vpack.c.b16 %v321, %v318
  %v394 = vpack.c.b16 %v325, %v322
  %v395 = vpack.c.b16 %v326, %v323
  %v396 = vpack.c.b16 %v327, %v324
  %v397 = vpack.c.b16 %v331, %v328
  %v398 = vpack.c.b16 %v332, %v329
  %v399 = vpack.c.b16 %v333, %v330
  %v400 = vpack.c.b16 %v337, %v334
  %v401 = vpack.c.b16 %v338, %v335
  %v402 = vpack.c.b16 %v339, %v336
  %v403 = vpack.c.b16 %v343, %v340
  %v404 = vpack.c.b16 %v344, %v341
  %v405 = vpack.c.b16 %v345, %v342
  %v406 = vpack.c.b16 %v349, %v346
  %v407 = vpack.c.b16 %v350, %v347
  %v408 = vpack.c.b16 %v351, %v348
  %v409 = vpack.c.b16 %v355, %v352
  %v410 = vpack.c.b16 %v356, %v353
  %v411 = vpack.c.b16 %v357, %v354
  %v412 = vpack.c.b16 %v361, %v358
  %v413 = vpack.c.b16 %v362, %v359
  %v414 = vpack.c.b16 %v363, %v360
  %v415 = vpack.c.b16 %v367, %v364
  %v416 = vpack.c.b16 %v368, %v365
  %v417 = vpack.c.b16 %v369, %v366
  %v514 = vunpack.c.l.b16 %v162
  %v515 = vunpack.c.l.b16 %v163
  %v516 = vunpack.c.l.b16 %v164
  %v517 = vunpack.c.l.b16 %v165
  %v518 = vunpack.c.l.b16 %v166
  %v519 = vunpack.c.l.b16 %v167
  %v520 = vunpack.c.l.b16 %v168
  %v521 = vunpack.c.l.b16 %v169
  %v522 = vunpack.c.l.b16 %v170
  %v523 = vunpack.c.l.b16 %v171
  %v524 = vunpack.c.l.b16 %v172
  %v525 = vunpack.c.l.b16 %v173
  %v526 = vunpack.c.l.b16 %v174
  %v527 = vunpack.c.l.b16 %v175
  %v528 = vunpack.c.l.b16 %v176
  %v529 = vunpack.c.l.b16 %v177
  %v530 = vunpack.c.l.b16 %v178
  %v531 = vunpack.c.l.b16 %v179
  %v532 = vunpack.c.l.b16 %v180
  %v533 = vunpack.c.l.b16 %v181
  %v534 = vunpack.c.l.b16 %v182
  %v535 = vunpack.c.l.b16 %v183
  %v536 = vunpack.c.l.b16 %v184
  %v537 = vunpack.c.l.b16 %v185
  %v538 = vunpack.c.l.b16 %v186
  %v539 = vunpack.c.l.b16 %v187
  %v540 = vunpack.c.l.b16 %v188
  %v541 = vunpack.c.l.b16 %v189
  %v542 = vunpack.c.l.b16 %v190
  %v543 = vunpack.c.l.b16 %v191
  %v544 = vunpack.c.l.b16 %v192
  %v545 = vunpack.c.l.b16 %v193
  %v546 = vunpack.c.l.b16 %v194
  %v547 = vunpack.c.l.b16 %v195
  %v548 = vunpack.c.l.b16 %v196
  %v549 = vunpack.c.l.b16 %v197
  %v550 = vunpack.c.l.b16 %v198
  %v551 = vunpack.c.l.b16 %v199
  %v552 = vunpack.c.l.b16 %v200
  %v553 = vunpack.c.l.b16 %v201
  %v554 = vunpack.c.l.b16 %v202
  %v555 = vunpack.c.l.b16 %v203
  %v556 = vunpack.c.l.b16 %v204
  %v557 = vunpack.c.l.b16 %v205
  %v558 = vunpack.c.l.b16 %v206
  %v559 = vunpack.c.l.b16 %v207
  %v560 = vunpack.c.l.b16 %v208
  %v561 = vunpack.c.l.b16 %v209
  %v562 = vpack.c.b16 %v515, %v514
  %v563 = vpack.c.b16 %v517, %v516
  %v564 = vpack.c.b16 %v519, %v518
  %v565 = vpack.c.b16 %v521, %v520
  %v566 = vpack.c.b16 %v523, %v522
  %v567 = vpack.c.b16 %v525, %v524
  %v568 = vpack.c.b16 %v527, %v526
  %v569 = vpack.c.b16 %v529, %v528
  %v570 = vpack.c.b16 %v531, %v530
  %v571 = vpack.c.b16 %v533, %v532
  %v572 = vpack.c.b16 %v535, %v534
  %v573 = vpack.c.b16 %v537, %v536
  %v574 = vpack.c.b16 %v539, %v538
  %v575 = vpack.c.b16 %v541, %v540
  %v576 = vpack.c.b16 %v543, %v542
  %v577 = vpack.c.b16 %v545, %v544
  %v578 = vpack.c.b16 %v547, %v546
  %v579 = vpack.c.b16 %v549, %v548
  %v580 = vpack.c.b16 %v551, %v550
  %v581 = vpack.c.b16 %v553, %v552
  %v582 = vpack.c.b16 %v555, %v554
  %v583 = vpack.c.b16 %v557, %v556
  %v584 = vpack.c.b16 %v559, %v558
  %v585 = vpack.c.b16 %v561, %v560
  %610 = vmatprep.subr.bf16.mxu0 0
  %611 = vmatpush1.bf16.msra.mxu0 %v569
  %612 = vmatprep.subr.bf16.mxu0 0
  %613 = vmatpush1.bf16.msra.mxu0 %v568
  %614 = vmatprep.subr.bf16.mxu0 0
  %615 = vmatpush1.bf16.msra.mxu0 %v567
  %616 = vmatprep.subr.bf16.mxu0 0
  %617 = vmatpush1.bf16.msra.mxu0 %v566
  %618 = vmatprep.subr.bf16.mxu0 0
  %619 = vmatpush1.bf16.msra.mxu0 %v565
  %620 = vmatprep.subr.bf16.mxu0 0
  %621 = vmatpush1.bf16.msra.mxu0 %v564
  %622 = vmatprep.subr.bf16.mxu0 0
  %623 = vmatpush1.bf16.msra.mxu0 %v563
  %624 = vmatprep.subr.bf16.mxu0 0
  %625 = vmatpush1.bf16.msra.mxu0 %v562
  %626 = vmatprep.subr.bf16.mxu0 0
  %627 = vmatpush2.bf16.msra.mxu0 %v577
  %628 = vmatprep.subr.bf16.mxu0 0
  %629 = vmatpush2.bf16.msra.mxu0 %v576
  %630 = vmatprep.subr.bf16.mxu0 0
  %631 = vmatpush2.bf16.msra.mxu0 %v575
  %632 = vmatprep.subr.bf16.mxu0 0
  %633 = vmatpush2.bf16.msra.mxu0 %v574
  %634 = vmatprep.subr.bf16.mxu0 0
  %635 = vmatpush2.bf16.msra.mxu0 %v573
  %636 = vmatprep.subr.bf16.mxu0 0
  %637 = vmatpush2.bf16.msra.mxu0 %v572
  %638 = vmatprep.subr.bf16.mxu0 0
  %639 = vmatpush2.bf16.msra.mxu0 %v571
  %640 = vmatprep.subr.bf16.mxu0 0
  %641 = vmatpush2.bf16.msra.mxu0 %v570
  %642 = vmatprep.mubr.bf16.mxu0 %v371
  %643 = vmatmul.mubr.bf16.gmra.mxu0 %v370
  %v644 = vpop.f32.mrf.mxu0
  %v645 = vadd.f32 0.0, %v644
  %v646 = vpop.f32.mrf.mxu0
  %v647 = vpop.f32.mrf.mxu0
  %v648 = vadd.f32 0.0, %v647
  %v649 = vpop.f32.mrf.mxu0
  %650 = vmatprep.mubr.bf16.mxu0 %v374
  %651 = vmatmul.mubr.bf16.gmra.mxu0 %v373
  %v652 = vpop.f32.mrf.mxu0
  %v653 = vadd.f32 0.0, %v652
  %v654 = vpop.f32.mrf.mxu0
  %v655 = vpop.f32.mrf.mxu0
  %v656 = vadd.f32 0.0, %v655
  %v657 = vpop.f32.mrf.mxu0
  %658 = vmatprep.mubr.bf16.mxu0 %v377
  %659 = vmatmul.mubr.bf16.gmra.mxu0 %v376
  %v660 = vpop.f32.mrf.mxu0
  %v661 = vadd.f32 0.0, %v660
  %v662 = vpop.f32.mrf.mxu0
  %v663 = vpop.f32.mrf.mxu0
  %v664 = vadd.f32 0.0, %v663
  %v665 = vpop.f32.mrf.mxu0
  %666 = vmatprep.mubr.bf16.mxu0 %v380
  %667 = vmatmul.mubr.bf16.gmra.mxu0 %v379
  %v668 = vpop.f32.mrf.mxu0
  %v669 = vadd.f32 0.0, %v668
  %v670 = vpop.f32.mrf.mxu0
  %v671 = vpop.f32.mrf.mxu0
  %v672 = vadd.f32 0.0, %v671
  %v673 = vpop.f32.mrf.mxu0
  %674 = vmatprep.mubr.bf16.mxu0 %v383
  %675 = vmatmul.mubr.bf16.gmra.mxu0 %v382
  %v676 = vpop.f32.mrf.mxu0
  %v677 = vadd.f32 0.0, %v676
  %v678 = vpop.f32.mrf.mxu0
  %v679 = vpop.f32.mrf.mxu0
  %v680 = vadd.f32 0.0, %v679
  %v681 = vpop.f32.mrf.mxu0
  %682 = vmatprep.mubr.bf16.mxu0 %v386
  %683 = vmatmul.mubr.bf16.gmra.mxu0 %v385
  %v684 = vpop.f32.mrf.mxu0
  %v685 = vadd.f32 0.0, %v684
  %v686 = vpop.f32.mrf.mxu0
  %v687 = vpop.f32.mrf.mxu0
  %v688 = vadd.f32 0.0, %v687
  %v689 = vpop.f32.mrf.mxu0
  %690 = vmatprep.mubr.bf16.mxu0 %v389
  %691 = vmatmul.mubr.bf16.gmra.mxu0 %v388
  %v692 = vpop.f32.mrf.mxu0
  %v693 = vadd.f32 0.0, %v692
  %v694 = vpop.f32.mrf.mxu0
  %v695 = vpop.f32.mrf.mxu0
  %v696 = vadd.f32 0.0, %v695
  %v697 = vpop.f32.mrf.mxu0
  %698 = vmatprep.mubr.bf16.mxu0 %v392
  %699 = vmatmul.mubr.bf16.gmra.mxu0 %v391
  %v700 = vpop.f32.mrf.mxu0
  %v701 = vadd.f32 0.0, %v700
  %v702 = vpop.f32.mrf.mxu0
  %v703 = vpop.f32.mrf.mxu0
  %v704 = vadd.f32 0.0, %v703
  %v705 = vpop.f32.mrf.mxu0
  %706 = vmatprep.mubr.bf16.mxu0 %v395
  %707 = vmatmul.mubr.bf16.gmra.mxu0 %v394
  %v708 = vpop.f32.mrf.mxu0
  %v709 = vadd.f32 0.0, %v708
  %v710 = vpop.f32.mrf.mxu0
  %v711 = vpop.f32.mrf.mxu0
  %v712 = vadd.f32 0.0, %v711
  %v713 = vpop.f32.mrf.mxu0
  %714 = vmatprep.mubr.bf16.mxu0 %v398
  %715 = vmatmul.mubr.bf16.gmra.mxu0 %v397
  %v716 = vpop.f32.mrf.mxu0
  %v717 = vadd.f32 0.0, %v716
  %v718 = vpop.f32.mrf.mxu0
  %v719 = vpop.f32.mrf.mxu0
  %v720 = vadd.f32 0.0, %v719
  %v721 = vpop.f32.mrf.mxu0
  %722 = vmatprep.mubr.bf16.mxu0 %v401
  %723 = vmatmul.mubr.bf16.gmra.mxu0 %v400
  %v724 = vpop.f32.mrf.mxu0
  %v725 = vadd.f32 0.0, %v724
  %v726 = vpop.f32.mrf.mxu0
  %v727 = vpop.f32.mrf.mxu0
  %v728 = vadd.f32 0.0, %v727
  %v729 = vpop.f32.mrf.mxu0
  %730 = vmatprep.mubr.bf16.mxu0 %v404
  %731 = vmatmul.mubr.bf16.gmra.mxu0 %v403
  %v732 = vpop.f32.mrf.mxu0
  %v733 = vadd.f32 0.0, %v732
  %v734 = vpop.f32.mrf.mxu0
  %v735 = vpop.f32.mrf.mxu0
  %v736 = vadd.f32 0.0, %v735
  %v737 = vpop.f32.mrf.mxu0
  %738 = vmatprep.mubr.bf16.mxu0 %v407
  %739 = vmatmul.mubr.bf16.gmra.mxu0 %v406
  %v740 = vpop.f32.mrf.mxu0
  %v741 = vadd.f32 0.0, %v740
  %v742 = vpop.f32.mrf.mxu0
  %v743 = vpop.f32.mrf.mxu0
  %v744 = vadd.f32 0.0, %v743
  %v745 = vpop.f32.mrf.mxu0
  %746 = vmatprep.mubr.bf16.mxu0 %v410
  %747 = vmatmul.mubr.bf16.gmra.mxu0 %v409
  %v748 = vpop.f32.mrf.mxu0
  %v749 = vadd.f32 0.0, %v748
  %v750 = vpop.f32.mrf.mxu0
  %v751 = vpop.f32.mrf.mxu0
  %v752 = vadd.f32 0.0, %v751
  %v753 = vpop.f32.mrf.mxu0
  %754 = vmatprep.mubr.bf16.mxu0 %v413
  %755 = vmatmul.mubr.bf16.gmra.mxu0 %v412
  %v756 = vpop.f32.mrf.mxu0
  %v757 = vadd.f32 0.0, %v756
  %v758 = vpop.f32.mrf.mxu0
  %v759 = vpop.f32.mrf.mxu0
  %v760 = vadd.f32 0.0, %v759
  %v761 = vpop.f32.mrf.mxu0
  %762 = vmatprep.mubr.bf16.mxu0 %v416
  %763 = vmatmul.mubr.bf16.gmra.mxu0 %v415
  %v764 = vpop.f32.mrf.mxu0
  %v765 = vadd.f32 0.0, %v764
  %v766 = vpop.f32.mrf.mxu0
  %v767 = vpop.f32.mrf.mxu0
  %v768 = vadd.f32 0.0, %v767
  %v769 = vpop.f32.mrf.mxu0
  %770 = vdwg.mxu0
  %771 = vmatprep.subr.bf16.mxu0 0
  %772 = vmatpush1.bf16.msra.mxu0 %v585
  %773 = vmatprep.subr.bf16.mxu0 0
  %774 = vmatpush1.bf16.msra.mxu0 %v584
  %775 = vmatprep.subr.bf16.mxu0 0
  %776 = vmatpush1.bf16.msra.mxu0 %v583
  %777 = vmatprep.subr.bf16.mxu0 0
  %778 = vmatpush1.bf16.msra.mxu0 %v582
  %779 = vmatprep.subr.bf16.mxu0 0
  %780 = vmatpush1.bf16.msra.mxu0 %v581
  %781 = vmatprep.subr.bf16.mxu0 0
  %782 = vmatpush1.bf16.msra.mxu0 %v580
  %783 = vmatprep.subr.bf16.mxu0 0
  %784 = vmatpush1.bf16.msra.mxu0 %v579
  %785 = vmatprep.subr.bf16.mxu0 0
  %786 = vmatpush1.bf16.msra.mxu0 %v578
  %787 = vmatprep.subr.bf16.mxu0 0
  %788 = vmatpush2.bf16.msra.mxu0 0
  %789 = vmatprep.subr.bf16.mxu0 0
  %790 = vmatpush2.bf16.msra.mxu0 0
  %791 = vmatprep.subr.bf16.mxu0 0
  %792 = vmatpush2.bf16.msra.mxu0 0
  %793 = vmatprep.subr.bf16.mxu0 0
  %794 = vmatpush2.bf16.msra.mxu0 0
  %795 = vmatprep.subr.bf16.mxu0 0
  %796 = vmatpush2.bf16.msra.mxu0 0
  %797 = vmatprep.subr.bf16.mxu0 0
  %798 = vmatpush2.bf16.msra.mxu0 0
  %799 = vmatprep.subr.bf16.mxu0 0
  %800 = vmatpush2.bf16.msra.mxu0 0
  %801 = vmatprep.subr.bf16.mxu0 0
  %802 = vmatpush2.bf16.msra.mxu0 0
  %803 = vmatprep.mubr.bf16.mxu0 0
  %804 = vmatmul.mubr.bf16.gmra.mxu0 %v372
  %v805 = vpop.f32.mrf.mxu0
  %v806 = vadd.f32 %v645, %v805
  %v807 = vpop.f32.mrf.mxu0
  %v808 = vpop.f32.mrf.mxu0
  %v809 = vadd.f32 %v648, %v808
  %v810 = vpop.f32.mrf.mxu0
  %811 = vmatprep.mubr.bf16.mxu0 0
  %812 = vmatmul.mubr.bf16.gmra.mxu0 %v375
  %v813 = vpop.f32.mrf.mxu0
  %v814 = vadd.f32 %v653, %v813
  %v815 = vpop.f32.mrf.mxu0
  %v816 = vpop.f32.mrf.mxu0
  %v817 = vadd.f32 %v656, %v816
  %v818 = vpop.f32.mrf.mxu0
  %819 = vmatprep.mubr.bf16.mxu0 0
  %820 = vmatmul.mubr.bf16.gmra.mxu0 %v378
  %v821 = vpop.f32.mrf.mxu0
  %v822 = vadd.f32 %v661, %v821
  %v823 = vpop.f32.mrf.mxu0
  %v824 = vpop.f32.mrf.mxu0
  %v825 = vadd.f32 %v664, %v824
  %v826 = vpop.f32.mrf.mxu0
  %827 = vmatprep.mubr.bf16.mxu0 0
  %828 = vmatmul.mubr.bf16.gmra.mxu0 %v381
  %v829 = vpop.f32.mrf.mxu0
  %v830 = vadd.f32 %v669, %v829
  %v831 = vpop.f32.mrf.mxu0
  %v832 = vpop.f32.mrf.mxu0
  %v833 = vadd.f32 %v672, %v832
  %v834 = vpop.f32.mrf.mxu0
  %835 = vmatprep.mubr.bf16.mxu0 0
  %836 = vmatmul.mubr.bf16.gmra.mxu0 %v384
  %v837 = vpop.f32.mrf.mxu0
  %v838 = vadd.f32 %v677, %v837
  %v839 = vpop.f32.mrf.mxu0
  %v840 = vpop.f32.mrf.mxu0
  %v841 = vadd.f32 %v680, %v840
  %v842 = vpop.f32.mrf.mxu0
  %843 = vmatprep.mubr.bf16.mxu0 0
  %844 = vmatmul.mubr.bf16.gmra.mxu0 %v387
  %v845 = vpop.f32.mrf.mxu0
  %v846 = vadd.f32 %v685, %v845
  %v847 = vpop.f32.mrf.mxu0
  %v848 = vpop.f32.mrf.mxu0
  %v849 = vadd.f32 %v688, %v848
  %v850 = vpop.f32.mrf.mxu0
  %851 = vmatprep.mubr.bf16.mxu0 0
  %852 = vmatmul.mubr.bf16.gmra.mxu0 %v390
  %v853 = vpop.f32.mrf.mxu0
  %v854 = vadd.f32 %v693, %v853
  %v855 = vpop.f32.mrf.mxu0
  %v856 = vpop.f32.mrf.mxu0
  %v857 = vadd.f32 %v696, %v856
  %v858 = vpop.f32.mrf.mxu0
  %859 = vmatprep.mubr.bf16.mxu0 0
  %860 = vmatmul.mubr.bf16.gmra.mxu0 %v393
  %v861 = vpop.f32.mrf.mxu0
  %v862 = vadd.f32 %v701, %v861
  %v863 = vpop.f32.mrf.mxu0
  %v864 = vpop.f32.mrf.mxu0
  %v865 = vadd.f32 %v704, %v864
  %v866 = vpop.f32.mrf.mxu0
  %867 = vmatprep.mubr.bf16.mxu0 0
  %868 = vmatmul.mubr.bf16.gmra.mxu0 %v396
  %v869 = vpop.f32.mrf.mxu0
  %v870 = vadd.f32 %v709, %v869
  %v871 = vpop.f32.mrf.mxu0
  %v872 = vpop.f32.mrf.mxu0
  %v873 = vadd.f32 %v712, %v872
  %v874 = vpop.f32.mrf.mxu0
  %875 = vmatprep.mubr.bf16.mxu0 0
  %876 = vmatmul.mubr.bf16.gmra.mxu0 %v399
  %v877 = vpop.f32.mrf.mxu0
  %v878 = vadd.f32 %v717, %v877
  %v879 = vpop.f32.mrf.mxu0
  %v880 = vpop.f32.mrf.mxu0
  %v881 = vadd.f32 %v720, %v880
  %v882 = vpop.f32.mrf.mxu0
  %883 = vmatprep.mubr.bf16.mxu0 0
  %884 = vmatmul.mubr.bf16.gmra.mxu0 %v402
  %v885 = vpop.f32.mrf.mxu0
  %v886 = vadd.f32 %v725, %v885
  %v887 = vpop.f32.mrf.mxu0
  %v888 = vpop.f32.mrf.mxu0
  %v889 = vadd.f32 %v728, %v888
  %v890 = vpop.f32.mrf.mxu0
  %891 = vmatprep.mubr.bf16.mxu0 0
  %892 = vmatmul.mubr.bf16.gmra.mxu0 %v405
  %v893 = vpop.f32.mrf.mxu0
  %v894 = vadd.f32 %v733, %v893
  %v895 = vpop.f32.mrf.mxu0
  %v896 = vpop.f32.mrf.mxu0
  %v897 = vadd.f32 %v736, %v896
  %v898 = vpop.f32.mrf.mxu0
  %899 = vmatprep.mubr.bf16.mxu0 0
  %900 = vmatmul.mubr.bf16.gmra.mxu0 %v408
  %v901 = vpop.f32.mrf.mxu0
  %v902 = vadd.f32 %v741, %v901
  %v903 = vpop.f32.mrf.mxu0
  %v904 = vpop.f32.mrf.mxu0
  %v905 = vadd.f32 %v744, %v904
  %v906 = vpop.f32.mrf.mxu0
  %907 = vmatprep.mubr.bf16.mxu0 0
  %908 = vmatmul.mubr.bf16.gmra.mxu0 %v411
  %v909 = vpop.f32.mrf.mxu0
  %v910 = vadd.f32 %v749, %v909
  %v911 = vpop.f32.mrf.mxu0
  %v912 = vpop.f32.mrf.mxu0
  %v913 = vadd.f32 %v752, %v912
  %v914 = vpop.f32.mrf.mxu0
  %915 = vmatprep.mubr.bf16.mxu0 0
  %916 = vmatmul.mubr.bf16.gmra.mxu0 %v414
  %v917 = vpop.f32.mrf.mxu0
  %v918 = vadd.f32 %v757, %v917
  %v919 = vpop.f32.mrf.mxu0
  %v920 = vpop.f32.mrf.mxu0
  %v921 = vadd.f32 %v760, %v920
  %v922 = vpop.f32.mrf.mxu0
  %923 = vmatprep.mubr.bf16.mxu0 0
  %924 = vmatmul.mubr.bf16.gmra.mxu0 %v417
  %v925 = vpop.f32.mrf.mxu0
  %v926 = vadd.f32 %v765, %v925
  %v927 = vpop.f32.mrf.mxu0
  %v928 = vpop.f32.mrf.mxu0
  %v929 = vadd.f32 %v768, %v928
  %v930 = vpop.f32.mrf.mxu0
  %931 = vdwg.mxu0
  %v932 = vadd.f32 %v66, %v806
  %v933 = vadd.f32 %v67, %v809
  %v934 = vadd.f32 %v68, %v814
  %v935 = vadd.f32 %v69, %v817
  %v936 = vadd.f32 %v70, %v822
  %v937 = vadd.f32 %v71, %v825
  %v938 = vadd.f32 %v72, %v830
  %v939 = vadd.f32 %v73, %v833
  %v940 = vadd.f32 %v74, %v838
  %v941 = vadd.f32 %v75, %v841
  %v942 = vadd.f32 %v76, %v846
  %v943 = vadd.f32 %v77, %v849
  %v944 = vadd.f32 %v78, %v854
  %v945 = vadd.f32 %v79, %v857
  %v946 = vadd.f32 %v80, %v862
  %v947 = vadd.f32 %v81, %v865
  %v948 = vadd.f32 %v82, %v870
  %v949 = vadd.f32 %v83, %v873
  %v950 = vadd.f32 %v84, %v878
  %v951 = vadd.f32 %v85, %v881
  %v952 = vadd.f32 %v86, %v886
  %v953 = vadd.f32 %v87, %v889
  %v954 = vadd.f32 %v88, %v894
  %v955 = vadd.f32 %v89, %v897
  %v956 = vadd.f32 %v90, %v902
  %v957 = vadd.f32 %v91, %v905
  %v958 = vadd.f32 %v92, %v910
  %v959 = vadd.f32 %v93, %v913
  %v960 = vadd.f32 %v94, %v918
  %v961 = vadd.f32 %v95, %v921
  %v962 = vadd.f32 %v96, %v926
  %v963 = vadd.f32 %v97, %v929
  %964 = vst [vmem:[#allocation2] sm:$0xff] %v932
  %965 = vst [vmem:[#allocation2 + $0x8] sm:$0xff] %v933
  %966 = vst [vmem:[#allocation2 + $0x10] sm:$0xff] %v934
  %967 = vst [vmem:[#allocation2 + $0x18] sm:$0xff] %v935
  %968 = vst [vmem:[#allocation2 + $0x20] sm:$0xff] %v936
  %969 = vst [vmem:[#allocation2 + $0x28] sm:$0xff] %v937
  %970 = vst [vmem:[#allocation2 + $0x30] sm:$0xff] %v938
  %971 = vst [vmem:[#allocation2 + $0x38] sm:$0xff] %v939
  %972 = vst [vmem:[#allocation2 + $0x40] sm:$0xff] %v940
  %973 = vst [vmem:[#allocation2 + $0x48] sm:$0xff] %v941
  %974 = vst [vmem:[#allocation2 + $0x50] sm:$0xff] %v942
  %975 = vst [vmem:[#allocation2 + $0x58] sm:$0xff] %v943
  %976 = vst [vmem:[#allocation2 + $0x60] sm:$0xff] %v944
  %977 = vst [vmem:[#allocation2 + $0x68] sm:$0xff] %v945
  %978 = vst [vmem:[#allocation2 + $0x70] sm:$0xff] %v946
  %979 = vst [vmem:[#allocation2 + $0x78] sm:$0xff] %v947
  %980 = vst [vmem:[#allocation2 + $0x80] sm:$0xff] %v948
  %981 = vst [vmem:[#allocation2 + $0x88] sm:$0xff] %v949
  %982 = vst [vmem:[#allocation2 + $0x90] sm:$0xff] %v950
  %983 = vst [vmem:[#allocation2 + $0x98] sm:$0xff] %v951
  %984 = vst [vmem:[#allocation2 + $0xa0] sm:$0xff] %v952
  %985 = vst [vmem:[#allocation2 + $0xa8] sm:$0xff] %v953
  %986 = vst [vmem:[#allocation2 + $0xb0] sm:$0xff] %v954
  %987 = vst [vmem:[#allocation2 + $0xb8] sm:$0xff] %v955
  %988 = vst [vmem:[#allocation2 + $0xc0] sm:$0xff] %v956
  %989 = vst [vmem:[#allocation2 + $0xc8] sm:$0xff] %v957
  %990 = vst [vmem:[#allocation2 + $0xd0] sm:$0xff] %v958
  %991 = vst [vmem:[#allocation2 + $0xd8] sm:$0xff] %v959
  %992 = vst [vmem:[#allocation2 + $0xe0] sm:$0xff] %v960
  %993 = vst [vmem:[#allocation2 + $0xe8] sm:$0xff] %v961
  %994 = vst [vmem:[#allocation2 + $0xf0] sm:$0xff] %v962
  %995 = vst [vmem:[#allocation2 + $0xf8] sm:$0xff] %v963
  // Predicated region
  $region38: #{union_rgcn_forward.1} parent=0 // pred_check
    %p996 = pneg %p30
  $region39: #{union_rgcn_forward.1} parent=0 // pred_check_branch
    %998 = sbr.rel (%p996) target = $region41
  $region40: #{union_rgcn_forward.1} parent=0 // pred_region
    %v999 = vld [vmem:[#allocation2] sm:$0xff]
    %v1000 = vld [vmem:[#allocation2 + $0x8] sm:$0xff]
    %v1001 = vld [vmem:[#allocation2 + $0x10] sm:$0xff]
    %v1002 = vld [vmem:[#allocation2 + $0x18] sm:$0xff]
    %v1003 = vld [vmem:[#allocation2 + $0x20] sm:$0xff]
    %v1004 = vld [vmem:[#allocation2 + $0x28] sm:$0xff]
    %v1005 = vld [vmem:[#allocation2 + $0x30] sm:$0xff]
    %v1006 = vld [vmem:[#allocation2 + $0x38] sm:$0xff]
    %v1007 = vld [vmem:[#allocation2 + $0x40] sm:$0xff]
    %v1008 = vld [vmem:[#allocation2 + $0x48] sm:$0xff]
    %v1009 = vld [vmem:[#allocation2 + $0x50] sm:$0xff]
    %v1010 = vld [vmem:[#allocation2 + $0x58] sm:$0xff]
    %v1011 = vld [vmem:[#allocation2 + $0x60] sm:$0xff]
    %v1012 = vld [vmem:[#allocation2 + $0x68] sm:$0xff]
    %v1013 = vld [vmem:[#allocation2 + $0x70] sm:$0xff]
    %v1014 = vld [vmem:[#allocation2 + $0x78] sm:$0xff]
    %v1015 = vld [vmem:[#allocation2 + $0x80] sm:$0xff]
    %v1016 = vld [vmem:[#allocation2 + $0x88] sm:$0xff]
    %v1017 = vld [vmem:[#allocation2 + $0x90] sm:$0xff]
    %v1018 = vld [vmem:[#allocation2 + $0x98] sm:$0xff]
    %v1019 = vld [vmem:[#allocation2 + $0xa0] sm:$0xff]
    %v1020 = vld [vmem:[#allocation2 + $0xa8] sm:$0xff]
    %v1021 = vld [vmem:[#allocation2 + $0xb0] sm:$0xff]
    %v1022 = vld [vmem:[#allocation2 + $0xb8] sm:$0xff]
    %v1023 = vld [vmem:[#allocation2 + $0xc0] sm:$0xff]
    %v1024 = vld [vmem:[#allocation2 + $0xc8] sm:$0xff]
    %v1025 = vld [vmem:[#allocation2 + $0xd0] sm:$0xff]
    %v1026 = vld [vmem:[#allocation2 + $0xd8] sm:$0xff]
    %v1027 = vld [vmem:[#allocation2 + $0xe0] sm:$0xff]
    %v1028 = vld [vmem:[#allocation2 + $0xe8] sm:$0xff]
    %v1029 = vld [vmem:[#allocation2 + $0xf0] sm:$0xff]
    %v1030 = vld [vmem:[#allocation2 + $0xf8] sm:$0xff]
    %v1031 = vld [vmem:[%s4] sm:$0xff]
    %v1032 = vld [vmem:[%s4 + $0x8] sm:$0xff]
    %v1033 = vld [vmem:[%s4 + $0x10] sm:$0xff]
    %v1034 = vld [vmem:[%s4 + $0x18] sm:$0xff]
    %v1035 = vld [vmem:[%s4 + $0x20] sm:$0xff]
    %v1036 = vld [vmem:[%s4 + $0x28] sm:$0xff]
    %v1037 = vld [vmem:[%s4 + $0x30] sm:$0xff]
    %v1038 = vld [vmem:[%s4 + $0x38] sm:$0xff]
    %v1039 = vld [vmem:[%s4 + $0x40] sm:$0xff]
    %v1040 = vld [vmem:[%s4 + $0x48] sm:$0xff]
    %v1041 = vld [vmem:[%s4 + $0x50] sm:$0xff]
    %v1042 = vld [vmem:[%s4 + $0x58] sm:$0xff]
    %v1043 = vld [vmem:[%s4 + $0x60] sm:$0xff]
    %v1044 = vld [vmem:[%s4 + $0x68] sm:$0xff]
    %v1045 = vld [vmem:[%s4 + $0x70] sm:$0xff]
    %v1046 = vld [vmem:[%s4 + $0x78] sm:$0xff]
    %v1047 = vld [vmem:[%s4 + $0x80] sm:$0xff]
    %v1048 = vld [vmem:[%s4 + $0x88] sm:$0xff]
    %v1049 = vld [vmem:[%s4 + $0x90] sm:$0xff]
    %v1050 = vld [vmem:[%s4 + $0x98] sm:$0xff]
    %v1051 = vld [vmem:[%s4 + $0xa0] sm:$0xff]
    %v1052 = vld [vmem:[%s4 + $0xa8] sm:$0xff]
    %v1053 = vld [vmem:[%s4 + $0xb0] sm:$0xff]
    %v1054 = vld [vmem:[%s4 + $0xb8] sm:$0xff]
    %v1055 = vld [vmem:[%s4 + $0xc0] sm:$0xff]
    %v1056 = vld [vmem:[%s4 + $0xc8] sm:$0xff]
    %v1057 = vld [vmem:[%s4 + $0xd0] sm:$0xff]
    %v1058 = vld [vmem:[%s4 + $0xd8] sm:$0xff]
    %v1059 = vld [vmem:[%s4 + $0xe0] sm:$0xff]
    %v1060 = vld [vmem:[%s4 + $0xe8] sm:$0xff]
    %v1061 = vld [vmem:[%s4 + $0xf0] sm:$0xff]
    %v1062 = vld [vmem:[%s4 + $0xf8] sm:$0xff]
    %1064 = vset.pattern.permute.xlu0 0
    %1065 = vperm.xlu0 %1064, %v1031
    %v1066 = vpop.permute.xlu0 %1065
    %1069 = vset.pattern.permute.xlu0 0
    %1070 = vperm.xlu0 %1069, %v1032
    %v1071 = vpop.permute.xlu0 %1070
    %1074 = vset.pattern.permute.xlu0 0
    %1075 = vperm.xlu0 %1074, %v1033
    %v1076 = vpop.permute.xlu0 %1075
    %1079 = vset.pattern.permute.xlu0 0
    %1080 = vperm.xlu0 %1079, %v1034
    %v1081 = vpop.permute.xlu0 %1080
    %1084 = vset.pattern.permute.xlu0 0
    %1085 = vperm.xlu0 %1084, %v1035
    %v1086 = vpop.permute.xlu0 %1085
    %1089 = vset.pattern.permute.xlu0 0
    %1090 = vperm.xlu0 %1089, %v1036
    %v1091 = vpop.permute.xlu0 %1090
    %1094 = vset.pattern.permute.xlu0 0
    %1095 = vperm.xlu0 %1094, %v1037
    %v1096 = vpop.permute.xlu0 %1095
    %1099 = vset.pattern.permute.xlu0 0
    %1100 = vperm.xlu0 %1099, %v1038
    %v1101 = vpop.permute.xlu0 %1100
    %1104 = vset.pattern.permute.xlu0 0
    %1105 = vperm.xlu0 %1104, %v1039
    %v1106 = vpop.permute.xlu0 %1105
    %1109 = vset.pattern.permute.xlu0 0
    %1110 = vperm.xlu0 %1109, %v1040
    %v1111 = vpop.permute.xlu0 %1110
    %1114 = vset.pattern.permute.xlu0 0
    %1115 = vperm.xlu0 %1114, %v1041
    %v1116 = vpop.permute.xlu0 %1115
    %1119 = vset.pattern.permute.xlu0 0
    %1120 = vperm.xlu0 %1119, %v1042
    %v1121 = vpop.permute.xlu0 %1120
    %1124 = vset.pattern.permute.xlu0 0
    %1125 = vperm.xlu0 %1124, %v1043
    %v1126 = vpop.permute.xlu0 %1125
    %1129 = vset.pattern.permute.xlu0 0
    %1130 = vperm.xlu0 %1129, %v1044
    %v1131 = vpop.permute.xlu0 %1130
    %1134 = vset.pattern.permute.xlu0 0
    %1135 = vperm.xlu0 %1134, %v1045
    %v1136 = vpop.permute.xlu0 %1135
    %1139 = vset.pattern.permute.xlu0 0
    %1140 = vperm.xlu0 %1139, %v1046
    %v1141 = vpop.permute.xlu0 %1140
    %1144 = vset.pattern.permute.xlu0 0
    %1145 = vperm.xlu0 %1144, %v1047
    %v1146 = vpop.permute.xlu0 %1145
    %1149 = vset.pattern.permute.xlu0 0
    %1150 = vperm.xlu0 %1149, %v1048
    %v1151 = vpop.permute.xlu0 %1150
    %1154 = vset.pattern.permute.xlu0 0
    %1155 = vperm.xlu0 %1154, %v1049
    %v1156 = vpop.permute.xlu0 %1155
    %1159 = vset.pattern.permute.xlu0 0
    %1160 = vperm.xlu0 %1159, %v1050
    %v1161 = vpop.permute.xlu0 %1160
    %1164 = vset.pattern.permute.xlu0 0
    %1165 = vperm.xlu0 %1164, %v1051
    %v1166 = vpop.permute.xlu0 %1165
    %1169 = vset.pattern.permute.xlu0 0
    %1170 = vperm.xlu0 %1169, %v1052
    %v1171 = vpop.permute.xlu0 %1170
    %1174 = vset.pattern.permute.xlu0 0
    %1175 = vperm.xlu0 %1174, %v1053
    %v1176 = vpop.permute.xlu0 %1175
    %1179 = vset.pattern.permute.xlu0 0
    %1180 = vperm.xlu0 %1179, %v1054
    %v1181 = vpop.permute.xlu0 %1180
    %1184 = vset.pattern.permute.xlu0 0
    %1185 = vperm.xlu0 %1184, %v1055
    %v1186 = vpop.permute.xlu0 %1185
    %1189 = vset.pattern.permute.xlu0 0
    %1190 = vperm.xlu0 %1189, %v1056
    %v1191 = vpop.permute.xlu0 %1190
    %1194 = vset.pattern.permute.xlu0 0
    %1195 = vperm.xlu0 %1194, %v1057
    %v1196 = vpop.permute.xlu0 %1195
    %1199 = vset.pattern.permute.xlu0 0
    %1200 = vperm.xlu0 %1199, %v1058
    %v1201 = vpop.permute.xlu0 %1200
    %1204 = vset.pattern.permute.xlu0 0
    %1205 = vperm.xlu0 %1204, %v1059
    %v1206 = vpop.permute.xlu0 %1205
    %1209 = vset.pattern.permute.xlu0 0
    %1210 = vperm.xlu0 %1209, %v1060
    %v1211 = vpop.permute.xlu0 %1210
    %1214 = vset.pattern.permute.xlu0 0
    %1215 = vperm.xlu0 %1214, %v1061
    %v1216 = vpop.permute.xlu0 %1215
    %1219 = vset.pattern.permute.xlu0 0
    %1220 = vperm.xlu0 %1219, %v1062
    %v1221 = vpop.permute.xlu0 %1220
    %v1223 = vmul.f32 %v999, %v1066
    %v1224 = vmul.f32 %v1000, %v1071
    %v1225 = vmul.f32 %v1001, %v1076
    %v1226 = vmul.f32 %v1002, %v1081
    %v1227 = vmul.f32 %v1003, %v1086
    %v1228 = vmul.f32 %v1004, %v1091
    %v1229 = vmul.f32 %v1005, %v1096
    %v1230 = vmul.f32 %v1006, %v1101
    %v1231 = vmul.f32 %v1007, %v1106
    %v1232 = vmul.f32 %v1008, %v1111
    %v1233 = vmul.f32 %v1009, %v1116
    %v1234 = vmul.f32 %v1010, %v1121
    %v1235 = vmul.f32 %v1011, %v1126
    %v1236 = vmul.f32 %v1012, %v1131
    %v1237 = vmul.f32 %v1013, %v1136
    %v1238 = vmul.f32 %v1014, %v1141
    %v1239 = vmul.f32 %v1015, %v1146
    %v1240 = vmul.f32 %v1016, %v1151
    %v1241 = vmul.f32 %v1017, %v1156
    %v1242 = vmul.f32 %v1018, %v1161
    %v1243 = vmul.f32 %v1019, %v1166
    %v1244 = vmul.f32 %v1020, %v1171
    %v1245 = vmul.f32 %v1021, %v1176
    %v1246 = vmul.f32 %v1022, %v1181
    %v1247 = vmul.f32 %v1023, %v1186
    %v1248 = vmul.f32 %v1024, %v1191
    %v1249 = vmul.f32 %v1025, %v1196
    %v1250 = vmul.f32 %v1026, %v1201
    %v1251 = vmul.f32 %v1027, %v1206
    %v1252 = vmul.f32 %v1028, %v1211
    %v1253 = vmul.f32 %v1029, %v1216
    %v1254 = vmul.f32 %v1030, %v1221
    %v1255 = vld [vmem:[%s2] sm:$0xff]
    %v1256 = vld [vmem:[%s2 + $0x8] sm:$0xff]
    %v1257 = vld [vmem:[%s2 + $0x10] sm:$0xff]
    %v1258 = vld [vmem:[%s2 + $0x18] sm:$0xff]
    %v1259 = vld [vmem:[%s2 + $0x20] sm:$0xff]
    %v1260 = vld [vmem:[%s2 + $0x28] sm:$0xff]
    %v1261 = vld [vmem:[%s2 + $0x30] sm:$0xff]
    %v1262 = vld [vmem:[%s2 + $0x38] sm:$0xff]
    %v1263 = vld [vmem:[%s2 + $0x40] sm:$0xff]
    %v1264 = vld [vmem:[%s2 + $0x48] sm:$0xff]
    %v1265 = vld [vmem:[%s2 + $0x50] sm:$0xff]
    %v1266 = vld [vmem:[%s2 + $0x58] sm:$0xff]
    %v1267 = vld [vmem:[%s2 + $0x60] sm:$0xff]
    %v1268 = vld [vmem:[%s2 + $0x68] sm:$0xff]
    %v1269 = vld [vmem:[%s2 + $0x70] sm:$0xff]
    %v1270 = vld [vmem:[%s2 + $0x78] sm:$0xff]
    %v1271 = vld [vmem:[%s2 + $0x80] sm:$0xff]
    %v1272 = vld [vmem:[%s2 + $0x88] sm:$0xff]
    %v1273 = vld [vmem:[%s2 + $0x90] sm:$0xff]
    %v1274 = vld [vmem:[%s2 + $0x98] sm:$0xff]
    %v1275 = vld [vmem:[%s2 + $0xa0] sm:$0xff]
    %v1276 = vld [vmem:[%s2 + $0xa8] sm:$0xff]
    %v1277 = vld [vmem:[%s2 + $0xb0] sm:$0xff]
    %v1278 = vld [vmem:[%s2 + $0xb8] sm:$0xff]
    %v1279 = vld [vmem:[%s2 + $0xc0] sm:$0xff]
    %v1280 = vld [vmem:[%s2 + $0xc8] sm:$0xff]
    %v1281 = vld [vmem:[%s2 + $0xd0] sm:$0xff]
    %v1282 = vld [vmem:[%s2 + $0xd8] sm:$0xff]
    %v1283 = vld [vmem:[%s2 + $0xe0] sm:$0xff]
    %v1284 = vld [vmem:[%s2 + $0xe8] sm:$0xff]
    %v1285 = vld [vmem:[%s2 + $0xf0] sm:$0xff]
    %v1286 = vld [vmem:[%s2 + $0xf8] sm:$0xff]
    %v1287 = vld [vmem:[%s5] sm:$0xf]
    %v1288 = vld [vmem:[%s5 + $0x4] sm:$0xf]
    %v1289 = vld [vmem:[%s5 + $0x8] sm:$0xf]
    %v1290 = vld [vmem:[%s5 + $0xc] sm:$0xf]
    %v1291 = vld [vmem:[%s5 + $0x10] sm:$0xf]
    %v1292 = vld [vmem:[%s5 + $0x14] sm:$0xf]
    %v1293 = vld [vmem:[%s5 + $0x18] sm:$0xf]
    %v1294 = vld [vmem:[%s5 + $0x1c] sm:$0xf]
    %v1295 = vld [vmem:[%s5 + $0x20] sm:$0xf]
    %v1296 = vld [vmem:[%s5 + $0x24] sm:$0xf]
    %v1297 = vld [vmem:[%s5 + $0x28] sm:$0xf]
    %v1298 = vld [vmem:[%s5 + $0x2c] sm:$0xf]
    %v1299 = vld [vmem:[%s5 + $0x30] sm:$0xf]
    %v1300 = vld [vmem:[%s5 + $0x34] sm:$0xf]
    %v1301 = vld [vmem:[%s5 + $0x38] sm:$0xf]
    %v1302 = vld [vmem:[%s5 + $0x3c] sm:$0xf]
    %v1303 = vld [vmem:[%s5 + $0x40] sm:$0xf]
    %v1304 = vld [vmem:[%s5 + $0x44] sm:$0xf]
    %v1305 = vld [vmem:[%s5 + $0x48] sm:$0xf]
    %v1306 = vld [vmem:[%s5 + $0x4c] sm:$0xf]
    %v1307 = vld [vmem:[%s5 + $0x50] sm:$0xf]
    %v1308 = vld [vmem:[%s5 + $0x54] sm:$0xf]
    %v1309 = vld [vmem:[%s5 + $0x58] sm:$0xf]
    %v1310 = vld [vmem:[%s5 + $0x5c] sm:$0xf]
    %v1311 = vld [vmem:[%s5 + $0x60] sm:$0xf]
    %v1312 = vld [vmem:[%s5 + $0x64] sm:$0xf]
    %v1313 = vld [vmem:[%s5 + $0x68] sm:$0xf]
    %v1314 = vld [vmem:[%s5 + $0x6c] sm:$0xf]
    %v1315 = vld [vmem:[%s5 + $0x70] sm:$0xf]
    %v1316 = vld [vmem:[%s5 + $0x74] sm:$0xf]
    %v1317 = vld [vmem:[%s5 + $0x78] sm:$0xf]
    %v1318 = vld [vmem:[%s5 + $0x7c] sm:$0xf]
    %v1351 = vunpack.c.l.b16 %v1255
    %v1352 = vunpack.c.h.b16 %v1255
    %v1353 = vunpack.c.l.b16 %v1256
    %v1354 = vunpack.c.h.b16 %v1256
    %v1355 = vunpack.c.l.b16 %v1257
    %v1356 = vunpack.c.h.b16 %v1257
    %v1357 = vunpack.c.l.b16 %v1258
    %v1358 = vunpack.c.h.b16 %v1258
    %v1359 = vunpack.c.l.b16 %v1259
    %v1360 = vunpack.c.h.b16 %v1259
    %v1361 = vunpack.c.l.b16 %v1260
    %v1362 = vunpack.c.h.b16 %v1260
    %v1363 = vunpack.c.l.b16 %v1261
    %v1364 = vunpack.c.h.b16 %v1261
    %v1365 = vunpack.c.l.b16 %v1262
    %v1366 = vunpack.c.h.b16 %v1262
    %v1367 = vunpack.c.l.b16 %v1263
    %v1368 = vunpack.c.h.b16 %v1263
    %v1369 = vunpack.c.l.b16 %v1264
    %v1370 = vunpack.c.h.b16 %v1264
    %v1371 = vunpack.c.l.b16 %v1265
    %v1372 = vunpack.c.h.b16 %v1265
    %v1373 = vunpack.c.l.b16 %v1266
    %v1374 = vunpack.c.h.b16 %v1266
    %v1375 = vunpack.c.l.b16 %v1267
    %v1376 = vunpack.c.h.b16 %v1267
    %v1377 = vunpack.c.l.b16 %v1268
    %v1378 = vunpack.c.h.b16 %v1268
    %v1379 = vunpack.c.l.b16 %v1269
    %v1380 = vunpack.c.h.b16 %v1269
    %v1381 = vunpack.c.l.b16 %v1270
    %v1382 = vunpack.c.h.b16 %v1270
    %v1383 = vunpack.c.l.b16 %v1271
    %v1384 = vunpack.c.h.b16 %v1271
    %v1385 = vunpack.c.l.b16 %v1272
    %v1386 = vunpack.c.h.b16 %v1272
    %v1387 = vunpack.c.l.b16 %v1273
    %v1388 = vunpack.c.h.b16 %v1273
    %v1389 = vunpack.c.l.b16 %v1274
    %v1390 = vunpack.c.h.b16 %v1274
    %v1391 = vunpack.c.l.b16 %v1275
    %v1392 = vunpack.c.h.b16 %v1275
    %v1393 = vunpack.c.l.b16 %v1276
    %v1394 = vunpack.c.h.b16 %v1276
    %v1395 = vunpack.c.l.b16 %v1277
    %v1396 = vunpack.c.h.b16 %v1277
    %v1397 = vunpack.c.l.b16 %v1278
    %v1398 = vunpack.c.h.b16 %v1278
    %v1399 = vunpack.c.l.b16 %v1279
    %v1400 = vunpack.c.h.b16 %v1279
    %v1401 = vunpack.c.l.b16 %v1280
    %v1402 = vunpack.c.h.b16 %v1280
    %v1403 = vunpack.c.l.b16 %v1281
    %v1404 = vunpack.c.h.b16 %v1281
    %v1405 = vunpack.c.l.b16 %v1282
    %v1406 = vunpack.c.h.b16 %v1282
    %v1407 = vunpack.c.l.b16 %v1283
    %v1408 = vunpack.c.h.b16 %v1283
    %v1409 = vunpack.c.l.b16 %v1284
    %v1410 = vunpack.c.h.b16 %v1284
    %v1411 = vunpack.c.l.b16 %v1285
    %v1412 = vunpack.c.h.b16 %v1285
    %v1413 = vunpack.c.l.b16 %v1286
    %v1414 = vunpack.c.h.b16 %v1286
    %v1415 = vpack.c.b16 %v1353, %v1351
    %v1416 = vpack.c.b16 %v1354, %v1352
    %v1417 = vpack.c.b16 %v1357, %v1355
    %v1418 = vpack.c.b16 %v1358, %v1356
    %v1419 = vpack.c.b16 %v1361, %v1359
    %v1420 = vpack.c.b16 %v1362, %v1360
    %v1421 = vpack.c.b16 %v1365, %v1363
    %v1422 = vpack.c.b16 %v1366, %v1364
    %v1423 = vpack.c.b16 %v1369, %v1367
    %v1424 = vpack.c.b16 %v1370, %v1368
    %v1425 = vpack.c.b16 %v1373, %v1371
    %v1426 = vpack.c.b16 %v1374, %v1372
    %v1427 = vpack.c.b16 %v1377, %v1375
    %v1428 = vpack.c.b16 %v1378, %v1376
    %v1429 = vpack.c.b16 %v1381, %v1379
    %v1430 = vpack.c.b16 %v1382, %v1380
    %v1431 = vpack.c.b16 %v1385, %v1383
    %v1432 = vpack.c.b16 %v1386, %v1384
    %v1433 = vpack.c.b16 %v1389, %v1387
    %v1434 = vpack.c.b16 %v1390, %v1388
    %v1435 = vpack.c.b16 %v1393, %v1391
    %v1436 = vpack.c.b16 %v1394, %v1392
    %v1437 = vpack.c.b16 %v1397, %v1395
    %v1438 = vpack.c.b16 %v1398, %v1396
    %v1439 = vpack.c.b16 %v1401, %v1399
    %v1440 = vpack.c.b16 %v1402, %v1400
    %v1441 = vpack.c.b16 %v1405, %v1403
    %v1442 = vpack.c.b16 %v1406, %v1404
    %v1443 = vpack.c.b16 %v1409, %v1407
    %v1444 = vpack.c.b16 %v1410, %v1408
    %v1445 = vpack.c.b16 %v1413, %v1411
    %v1446 = vpack.c.b16 %v1414, %v1412
    %v1511 = vunpack.c.l.b16 %v1287
    %v1512 = vunpack.c.l.b16 %v1288
    %v1513 = vunpack.c.l.b16 %v1289
    %v1514 = vunpack.c.l.b16 %v1290
    %v1515 = vunpack.c.l.b16 %v1291
    %v1516 = vunpack.c.l.b16 %v1292
    %v1517 = vunpack.c.l.b16 %v1293
    %v1518 = vunpack.c.l.b16 %v1294
    %v1519 = vunpack.c.l.b16 %v1295
    %v1520 = vunpack.c.l.b16 %v1296
    %v1521 = vunpack.c.l.b16 %v1297
    %v1522 = vunpack.c.l.b16 %v1298
    %v1523 = vunpack.c.l.b16 %v1299
    %v1524 = vunpack.c.l.b16 %v1300
    %v1525 = vunpack.c.l.b16 %v1301
    %v1526 = vunpack.c.l.b16 %v1302
    %v1527 = vunpack.c.l.b16 %v1303
    %v1528 = vunpack.c.l.b16 %v1304
    %v1529 = vunpack.c.l.b16 %v1305
    %v1530 = vunpack.c.l.b16 %v1306
    %v1531 = vunpack.c.l.b16 %v1307
    %v1532 = vunpack.c.l.b16 %v1308
    %v1533 = vunpack.c.l.b16 %v1309
    %v1534 = vunpack.c.l.b16 %v1310
    %v1535 = vunpack.c.l.b16 %v1311
    %v1536 = vunpack.c.l.b16 %v1312
    %v1537 = vunpack.c.l.b16 %v1313
    %v1538 = vunpack.c.l.b16 %v1314
    %v1539 = vunpack.c.l.b16 %v1315
    %v1540 = vunpack.c.l.b16 %v1316
    %v1541 = vunpack.c.l.b16 %v1317
    %v1542 = vunpack.c.l.b16 %v1318
    %v1543 = vpack.c.b16 %v1512, %v1511
    %v1544 = vpack.c.b16 %v1514, %v1513
    %v1545 = vpack.c.b16 %v1516, %v1515
    %v1546 = vpack.c.b16 %v1518, %v1517
    %v1547 = vpack.c.b16 %v1520, %v1519
    %v1548 = vpack.c.b16 %v1522, %v1521
    %v1549 = vpack.c.b16 %v1524, %v1523
    %v1550 = vpack.c.b16 %v1526, %v1525
    %v1551 = vpack.c.b16 %v1528, %v1527
    %v1552 = vpack.c.b16 %v1530, %v1529
    %v1553 = vpack.c.b16 %v1532, %v1531
    %v1554 = vpack.c.b16 %v1534, %v1533
    %v1555 = vpack.c.b16 %v1536, %v1535
    %v1556 = vpack.c.b16 %v1538, %v1537
    %v1557 = vpack.c.b16 %v1540, %v1539
    %v1558 = vpack.c.b16 %v1542, %v1541
    %1575 = vmatprep.subr.bf16.mxu0 0
    %1576 = vmatpush1.bf16.msra.mxu0 %v1550
    %1577 = vmatprep.subr.bf16.mxu0 0
    %1578 = vmatpush1.bf16.msra.mxu0 %v1549
    %1579 = vmatprep.subr.bf16.mxu0 0
    %1580 = vmatpush1.bf16.msra.mxu0 %v1548
    %1581 = vmatprep.subr.bf16.mxu0 0
    %1582 = vmatpush1.bf16.msra.mxu0 %v1547
    %1583 = vmatprep.subr.bf16.mxu0 0
    %1584 = vmatpush1.bf16.msra.mxu0 %v1546
    %1585 = vmatprep.subr.bf16.mxu0 0
    %1586 = vmatpush1.bf16.msra.mxu0 %v1545
    %1587 = vmatprep.subr.bf16.mxu0 0
    %1588 = vmatpush1.bf16.msra.mxu0 %v1544
    %1589 = vmatprep.subr.bf16.mxu0 0
    %1590 = vmatpush1.bf16.msra.mxu0 %v1543
    %1591 = vmatprep.subr.bf16.mxu0 0
    %1592 = vmatpush2.bf16.msra.mxu0 %v1558
    %1593 = vmatprep.subr.bf16.mxu0 0
    %1594 = vmatpush2.bf16.msra.mxu0 %v1557
    %1595 = vmatprep.subr.bf16.mxu0 0
    %1596 = vmatpush2.bf16.msra.mxu0 %v1556
    %1597 = vmatprep.subr.bf16.mxu0 0
    %1598 = vmatpush2.bf16.msra.mxu0 %v1555
    %1599 = vmatprep.subr.bf16.mxu0 0
    %1600 = vmatpush2.bf16.msra.mxu0 %v1554
    %1601 = vmatprep.subr.bf16.mxu0 0
    %1602 = vmatpush2.bf16.msra.mxu0 %v1553
    %1603 = vmatprep.subr.bf16.mxu0 0
    %1604 = vmatpush2.bf16.msra.mxu0 %v1552
    %1605 = vmatprep.subr.bf16.mxu0 0
    %1606 = vmatpush2.bf16.msra.mxu0 %v1551
    %1607 = vmatprep.mubr.bf16.mxu0 %v1416
    %1608 = vmatmul.mubr.bf16.gmra.mxu0 %v1415
    %v1609 = vpop.f32.mrf.mxu0
    %v1610 = vadd.f32 0.0, %v1609
    %v1611 = vpop.f32.mrf.mxu0
    %v1612 = vpop.f32.mrf.mxu0
    %v1613 = vadd.f32 0.0, %v1612
    %v1614 = vpop.f32.mrf.mxu0
    %1615 = vmatprep.mubr.bf16.mxu0 %v1418
    %1616 = vmatmul.mubr.bf16.gmra.mxu0 %v1417
    %v1617 = vpop.f32.mrf.mxu0
    %v1618 = vadd.f32 0.0, %v1617
    %v1619 = vpop.f32.mrf.mxu0
    %v1620 = vpop.f32.mrf.mxu0
    %v1621 = vadd.f32 0.0, %v1620
    %v1622 = vpop.f32.mrf.mxu0
    %1623 = vmatprep.mubr.bf16.mxu0 %v1420
    %1624 = vmatmul.mubr.bf16.gmra.mxu0 %v1419
    %v1625 = vpop.f32.mrf.mxu0
    %v1626 = vadd.f32 0.0, %v1625
    %v1627 = vpop.f32.mrf.mxu0
    %v1628 = vpop.f32.mrf.mxu0
    %v1629 = vadd.f32 0.0, %v1628
    %v1630 = vpop.f32.mrf.mxu0
    %1631 = vmatprep.mubr.bf16.mxu0 %v1422
    %1632 = vmatmul.mubr.bf16.gmra.mxu0 %v1421
    %v1633 = vpop.f32.mrf.mxu0
    %v1634 = vadd.f32 0.0, %v1633
    %v1635 = vpop.f32.mrf.mxu0
    %v1636 = vpop.f32.mrf.mxu0
    %v1637 = vadd.f32 0.0, %v1636
    %v1638 = vpop.f32.mrf.mxu0
    %1639 = vmatprep.mubr.bf16.mxu0 %v1424
    %1640 = vmatmul.mubr.bf16.gmra.mxu0 %v1423
    %v1641 = vpop.f32.mrf.mxu0
    %v1642 = vadd.f32 0.0, %v1641
    %v1643 = vpop.f32.mrf.mxu0
    %v1644 = vpop.f32.mrf.mxu0
    %v1645 = vadd.f32 0.0, %v1644
    %v1646 = vpop.f32.mrf.mxu0
    %1647 = vmatprep.mubr.bf16.mxu0 %v1426
    %1648 = vmatmul.mubr.bf16.gmra.mxu0 %v1425
    %v1649 = vpop.f32.mrf.mxu0
    %v1650 = vadd.f32 0.0, %v1649
    %v1651 = vpop.f32.mrf.mxu0
    %v1652 = vpop.f32.mrf.mxu0
    %v1653 = vadd.f32 0.0, %v1652
    %v1654 = vpop.f32.mrf.mxu0
    %1655 = vmatprep.mubr.bf16.mxu0 %v1428
    %1656 = vmatmul.mubr.bf16.gmra.mxu0 %v1427
    %v1657 = vpop.f32.mrf.mxu0
    %v1658 = vadd.f32 0.0, %v1657
    %v1659 = vpop.f32.mrf.mxu0
    %v1660 = vpop.f32.mrf.mxu0
    %v1661 = vadd.f32 0.0, %v1660
    %v1662 = vpop.f32.mrf.mxu0
    %1663 = vmatprep.mubr.bf16.mxu0 %v1430
    %1664 = vmatmul.mubr.bf16.gmra.mxu0 %v1429
    %v1665 = vpop.f32.mrf.mxu0
    %v1666 = vadd.f32 0.0, %v1665
    %v1667 = vpop.f32.mrf.mxu0
    %v1668 = vpop.f32.mrf.mxu0
    %v1669 = vadd.f32 0.0, %v1668
    %v1670 = vpop.f32.mrf.mxu0
    %1671 = vmatprep.mubr.bf16.mxu0 %v1432
    %1672 = vmatmul.mubr.bf16.gmra.mxu0 %v1431
    %v1673 = vpop.f32.mrf.mxu0
    %v1674 = vadd.f32 0.0, %v1673
    %v1675 = vpop.f32.mrf.mxu0
    %v1676 = vpop.f32.mrf.mxu0
    %v1677 = vadd.f32 0.0, %v1676
    %v1678 = vpop.f32.mrf.mxu0
    %1679 = vmatprep.mubr.bf16.mxu0 %v1434
    %1680 = vmatmul.mubr.bf16.gmra.mxu0 %v1433
    %v1681 = vpop.f32.mrf.mxu0
    %v1682 = vadd.f32 0.0, %v1681
    %v1683 = vpop.f32.mrf.mxu0
    %v1684 = vpop.f32.mrf.mxu0
    %v1685 = vadd.f32 0.0, %v1684
    %v1686 = vpop.f32.mrf.mxu0
    %1687 = vmatprep.mubr.bf16.mxu0 %v1436
    %1688 = vmatmul.mubr.bf16.gmra.mxu0 %v1435
    %v1689 = vpop.f32.mrf.mxu0
    %v1690 = vadd.f32 0.0, %v1689
    %v1691 = vpop.f32.mrf.mxu0
    %v1692 = vpop.f32.mrf.mxu0
    %v1693 = vadd.f32 0.0, %v1692
    %v1694 = vpop.f32.mrf.mxu0
    %1695 = vmatprep.mubr.bf16.mxu0 %v1438
    %1696 = vmatmul.mubr.bf16.gmra.mxu0 %v1437
    %v1697 = vpop.f32.mrf.mxu0
    %v1698 = vadd.f32 0.0, %v1697
    %v1699 = vpop.f32.mrf.mxu0
    %v1700 = vpop.f32.mrf.mxu0
    %v1701 = vadd.f32 0.0, %v1700
    %v1702 = vpop.f32.mrf.mxu0
    %1703 = vmatprep.mubr.bf16.mxu0 %v1440
    %1704 = vmatmul.mubr.bf16.gmra.mxu0 %v1439
    %v1705 = vpop.f32.mrf.mxu0
    %v1706 = vadd.f32 0.0, %v1705
    %v1707 = vpop.f32.mrf.mxu0
    %v1708 = vpop.f32.mrf.mxu0
    %v1709 = vadd.f32 0.0, %v1708
    %v1710 = vpop.f32.mrf.mxu0
    %1711 = vmatprep.mubr.bf16.mxu0 %v1442
    %1712 = vmatmul.mubr.bf16.gmra.mxu0 %v1441
    %v1713 = vpop.f32.mrf.mxu0
    %v1714 = vadd.f32 0.0, %v1713
    %v1715 = vpop.f32.mrf.mxu0
    %v1716 = vpop.f32.mrf.mxu0
    %v1717 = vadd.f32 0.0, %v1716
    %v1718 = vpop.f32.mrf.mxu0
    %1719 = vmatprep.mubr.bf16.mxu0 %v1444
    %1720 = vmatmul.mubr.bf16.gmra.mxu0 %v1443
    %v1721 = vpop.f32.mrf.mxu0
    %v1722 = vadd.f32 0.0, %v1721
    %v1723 = vpop.f32.mrf.mxu0
    %v1724 = vpop.f32.mrf.mxu0
    %v1725 = vadd.f32 0.0, %v1724
    %v1726 = vpop.f32.mrf.mxu0
    %1727 = vmatprep.mubr.bf16.mxu0 %v1446
    %1728 = vmatmul.mubr.bf16.gmra.mxu0 %v1445
    %v1729 = vpop.f32.mrf.mxu0
    %v1730 = vadd.f32 0.0, %v1729
    %v1731 = vpop.f32.mrf.mxu0
    %v1732 = vpop.f32.mrf.mxu0
    %v1733 = vadd.f32 0.0, %v1732
    %v1734 = vpop.f32.mrf.mxu0
    %1735 = vdwg.mxu0
    %v1736 = vld [vmem:[%s3] sm:$0xf]
    %v1737 = vld [vmem:[%s3 + $0x4] sm:$0xf]
    %v1738 = vld [vmem:[%s3 + $0x8] sm:$0xf]
    %v1739 = vld [vmem:[%s3 + $0xc] sm:$0xf]
    %v1740 = vld [vmem:[%s3 + $0x10] sm:$0xf]
    %v1741 = vld [vmem:[%s3 + $0x14] sm:$0xf]
    %v1742 = vld [vmem:[%s3 + $0x18] sm:$0xf]
    %v1743 = vld [vmem:[%s3 + $0x1c] sm:$0xf]
    %v1744 = vld [vmem:[%s3 + $0x20] sm:$0xf]
    %v1745 = vld [vmem:[%s3 + $0x24] sm:$0xf]
    %v1746 = vld [vmem:[%s3 + $0x28] sm:$0xf]
    %v1747 = vld [vmem:[%s3 + $0x2c] sm:$0xf]
    %v1748 = vld [vmem:[%s3 + $0x30] sm:$0xf]
    %v1749 = vld [vmem:[%s3 + $0x34] sm:$0xf]
    %v1750 = vld [vmem:[%s3 + $0x38] sm:$0xf]
    %v1751 = vld [vmem:[%s3 + $0x3c] sm:$0xf]
    %v1752 = vld [vmem:[%s3 + $0x40] sm:$0xf]
    %v1753 = vld [vmem:[%s3 + $0x44] sm:$0xf]
    %v1754 = vld [vmem:[%s3 + $0x48] sm:$0xf]
    %v1755 = vld [vmem:[%s3 + $0x4c] sm:$0xf]
    %v1756 = vld [vmem:[%s3 + $0x50] sm:$0xf]
    %v1757 = vld [vmem:[%s3 + $0x54] sm:$0xf]
    %v1758 = vld [vmem:[%s3 + $0x58] sm:$0xf]
    %v1759 = vld [vmem:[%s3 + $0x5c] sm:$0xf]
    %v1760 = vld [vmem:[%s3 + $0x60] sm:$0xf]
    %v1761 = vld [vmem:[%s3 + $0x64] sm:$0xf]
    %v1762 = vld [vmem:[%s3 + $0x68] sm:$0xf]
    %v1763 = vld [vmem:[%s3 + $0x6c] sm:$0xf]
    %v1764 = vld [vmem:[%s3 + $0x70] sm:$0xf]
    %v1765 = vld [vmem:[%s3 + $0x74] sm:$0xf]
    %v1766 = vld [vmem:[%s3 + $0x78] sm:$0xf]
    %v1767 = vld [vmem:[%s3 + $0x7c] sm:$0xf]
    %v1768 = vunpack.c.l.bf16 %v1736
    %v1769 = vunpack.c.l.bf16 %v1737
    %v1770 = vunpack.c.l.bf16 %v1738
    %v1771 = vunpack.c.l.bf16 %v1739
    %v1772 = vunpack.c.l.bf16 %v1740
    %v1773 = vunpack.c.l.bf16 %v1741
    %v1774 = vunpack.c.l.bf16 %v1742
    %v1775 = vunpack.c.l.bf16 %v1743
    %v1776 = vunpack.c.l.bf16 %v1744
    %v1777 = vunpack.c.l.bf16 %v1745
    %v1778 = vunpack.c.l.bf16 %v1746
    %v1779 = vunpack.c.l.bf16 %v1747
    %v1780 = vunpack.c.l.bf16 %v1748
    %v1781 = vunpack.c.l.bf16 %v1749
    %v1782 = vunpack.c.l.bf16 %v1750
    %v1783 = vunpack.c.l.bf16 %v1751
    %v1784 = vunpack.c.l.bf16 %v1752
    %v1785 = vunpack.c.l.bf16 %v1753
    %v1786 = vunpack.c.l.bf16 %v1754
    %v1787 = vunpack.c.l.bf16 %v1755
    %v1788 = vunpack.c.l.bf16 %v1756
    %v1789 = vunpack.c.l.bf16 %v1757
    %v1790 = vunpack.c.l.bf16 %v1758
    %v1791 = vunpack.c.l.bf16 %v1759
    %v1792 = vunpack.c.l.bf16 %v1760
    %v1793 = vunpack.c.l.bf16 %v1761
    %v1794 = vunpack.c.l.bf16 %v1762
    %v1795 = vunpack.c.l.bf16 %v1763
    %v1796 = vunpack.c.l.bf16 %v1764
    %v1797 = vunpack.c.l.bf16 %v1765
    %v1798 = vunpack.c.l.bf16 %v1766
    %v1799 = vunpack.c.l.bf16 %v1767
    %v1800 = vld [vmem:[%s6] sm:$0xf]
    %v1801 = vld [vmem:[%s6 + $0x4] sm:$0xf]
    %v1802 = vld [vmem:[%s6 + $0x8] sm:$0xf]
    %v1803 = vld [vmem:[%s6 + $0xc] sm:$0xf]
    %v1804 = vld [vmem:[%s6 + $0x10] sm:$0xf]
    %v1805 = vld [vmem:[%s6 + $0x14] sm:$0xf]
    %v1806 = vld [vmem:[%s6 + $0x18] sm:$0xf]
    %v1807 = vld [vmem:[%s6 + $0x1c] sm:$0xf]
    %v1808 = vld [vmem:[%s6 + $0x20] sm:$0xf]
    %v1809 = vld [vmem:[%s6 + $0x24] sm:$0xf]
    %v1810 = vld [vmem:[%s6 + $0x28] sm:$0xf]
    %v1811 = vld [vmem:[%s6 + $0x2c] sm:$0xf]
    %v1812 = vld [vmem:[%s6 + $0x30] sm:$0xf]
    %v1813 = vld [vmem:[%s6 + $0x34] sm:$0xf]
    %v1814 = vld [vmem:[%s6 + $0x38] sm:$0xf]
    %v1815 = vld [vmem:[%s6 + $0x3c] sm:$0xf]
    %v1816 = vld [vmem:[%s7] sm:$0x1]
    %v1818 = vlaneseq
    %v1819 = vshrl.u32 %v1818, 7
    %v1820 = vsub.s32 0, %v1819
    %v1821 = vrot.slane %v1816, %v1820
    %v1855 = vunpack.c.l.b16 %v1736
    %v1856 = vunpack.c.l.b16 %v1737
    %v1857 = vunpack.c.l.b16 %v1738
    %v1858 = vunpack.c.l.b16 %v1739
    %v1859 = vunpack.c.l.b16 %v1740
    %v1860 = vunpack.c.l.b16 %v1741
    %v1861 = vunpack.c.l.b16 %v1742
    %v1862 = vunpack.c.l.b16 %v1743
    %v1863 = vunpack.c.l.b16 %v1744
    %v1864 = vunpack.c.l.b16 %v1745
    %v1865 = vunpack.c.l.b16 %v1746
    %v1866 = vunpack.c.l.b16 %v1747
    %v1867 = vunpack.c.l.b16 %v1748
    %v1868 = vunpack.c.l.b16 %v1749
    %v1869 = vunpack.c.l.b16 %v1750
    %v1870 = vunpack.c.l.b16 %v1751
    %v1871 = vunpack.c.l.b16 %v1752
    %v1872 = vunpack.c.l.b16 %v1753
    %v1873 = vunpack.c.l.b16 %v1754
    %v1874 = vunpack.c.l.b16 %v1755
    %v1875 = vunpack.c.l.b16 %v1756
    %v1876 = vunpack.c.l.b16 %v1757
    %v1877 = vunpack.c.l.b16 %v1758
    %v1878 = vunpack.c.l.b16 %v1759
    %v1879 = vunpack.c.l.b16 %v1760
    %v1880 = vunpack.c.l.b16 %v1761
    %v1881 = vunpack.c.l.b16 %v1762
    %v1882 = vunpack.c.l.b16 %v1763
    %v1883 = vunpack.c.l.b16 %v1764
    %v1884 = vunpack.c.l.b16 %v1765
    %v1885 = vunpack.c.l.b16 %v1766
    %v1886 = vunpack.c.l.b16 %v1767
    %v1887 = vpack.c.b16 %v1856, %v1855
    %v1888 = vpack.c.b16 %v1858, %v1857
    %v1889 = vpack.c.b16 %v1860, %v1859
    %v1890 = vpack.c.b16 %v1862, %v1861
    %v1891 = vpack.c.b16 %v1864, %v1863
    %v1892 = vpack.c.b16 %v1866, %v1865
    %v1893 = vpack.c.b16 %v1868, %v1867
    %v1894 = vpack.c.b16 %v1870, %v1869
    %v1895 = vpack.c.b16 %v1872, %v1871
    %v1896 = vpack.c.b16 %v1874, %v1873
    %v1897 = vpack.c.b16 %v1876, %v1875
    %v1898 = vpack.c.b16 %v1878, %v1877
    %v1899 = vpack.c.b16 %v1880, %v1879
    %v1900 = vpack.c.b16 %v1882, %v1881
    %v1901 = vpack.c.b16 %v1884, %v1883
    %v1902 = vpack.c.b16 %v1886, %v1885
    %v1935 = vunpack.c.l.b16 %v1800
    %v1936 = vunpack.c.l.b16 %v1801
    %v1937 = vunpack.c.l.b16 %v1802
    %v1938 = vunpack.c.l.b16 %v1803
    %v1939 = vunpack.c.l.b16 %v1804
    %v1940 = vunpack.c.l.b16 %v1805
    %v1941 = vunpack.c.l.b16 %v1806
    %v1942 = vunpack.c.l.b16 %v1807
    %v1943 = vunpack.c.l.b16 %v1808
    %v1944 = vunpack.c.l.b16 %v1809
    %v1945 = vunpack.c.l.b16 %v1810
    %v1946 = vunpack.c.l.b16 %v1811
    %v1947 = vunpack.c.l.b16 %v1812
    %v1948 = vunpack.c.l.b16 %v1813
    %v1949 = vunpack.c.l.b16 %v1814
    %v1950 = vunpack.c.l.b16 %v1815
    %v1951 = vpack.c.b16 %v1936, %v1935
    %v1952 = vpack.c.b16 %v1938, %v1937
    %v1953 = vpack.c.b16 %v1940, %v1939
    %v1954 = vpack.c.b16 %v1942, %v1941
    %v1955 = vpack.c.b16 %v1944, %v1943
    %v1956 = vpack.c.b16 %v1946, %v1945
    %v1957 = vpack.c.b16 %v1948, %v1947
    %v1958 = vpack.c.b16 %v1950, %v1949
    %1967 = vmatprep.subr.bf16.mxu0 0
    %1968 = vmatpush1.bf16.msra.mxu0 %v1958
    %1969 = vmatprep.subr.bf16.mxu0 0
    %1970 = vmatpush1.bf16.msra.mxu0 %v1957
    %1971 = vmatprep.subr.bf16.mxu0 0
    %1972 = vmatpush1.bf16.msra.mxu0 %v1956
    %1973 = vmatprep.subr.bf16.mxu0 0
    %1974 = vmatpush1.bf16.msra.mxu0 %v1955
    %1975 = vmatprep.subr.bf16.mxu0 0
    %1976 = vmatpush1.bf16.msra.mxu0 %v1954
    %1977 = vmatprep.subr.bf16.mxu0 0
    %1978 = vmatpush1.bf16.msra.mxu0 %v1953
    %1979 = vmatprep.subr.bf16.mxu0 0
    %1980 = vmatpush1.bf16.msra.mxu0 %v1952
    %1981 = vmatprep.subr.bf16.mxu0 0
    %1982 = vmatpush1.bf16.msra.mxu0 %v1951
    %1983 = vmatprep.subr.bf16.mxu0 0
    %1984 = vmatpush2.bf16.msra.mxu0 0
    %1985 = vmatprep.subr.bf16.mxu0 0
    %1986 = vmatpush2.bf16.msra.mxu0 0
    %1987 = vmatprep.subr.bf16.mxu0 0
    %1988 = vmatpush2.bf16.msra.mxu0 0
    %1989 = vmatprep.subr.bf16.mxu0 0
    %1990 = vmatpush2.bf16.msra.mxu0 0
    %1991 = vmatprep.subr.bf16.mxu0 0
    %1992 = vmatpush2.bf16.msra.mxu0 0
    %1993 = vmatprep.subr.bf16.mxu0 0
    %1994 = vmatpush2.bf16.msra.mxu0 0
    %1995 = vmatprep.subr.bf16.mxu0 0
    %1996 = vmatpush2.bf16.msra.mxu0 0
    %1997 = vmatprep.subr.bf16.mxu0 0
    %1998 = vmatpush2.bf16.msra.mxu0 0
    %1999 = vmatprep.mubr.bf16.mxu0 0
    %2000 = vmatmul.mubr.bf16.gmra.mxu0 %v1887
    %v2001 = vpop.f32.mrf.mxu0
    %v2002 = vadd.f32 %v1821, %v2001
    %v2003 = vpop.f32.mrf.mxu0
    %v2004 = vpop.f32.mrf.mxu0
    %v2005 = vadd.f32 %v1821, %v2004
    %v2006 = vpop.f32.mrf.mxu0
    %2007 = vmatprep.mubr.bf16.mxu0 0
    %2008 = vmatmul.mubr.bf16.gmra.mxu0 %v1888
    %v2009 = vpop.f32.mrf.mxu0
    %v2010 = vadd.f32 %v1821, %v2009
    %v2011 = vpop.f32.mrf.mxu0
    %v2012 = vpop.f32.mrf.mxu0
    %v2013 = vadd.f32 %v1821, %v2012
    %v2014 = vpop.f32.mrf.mxu0
    %2015 = vmatprep.mubr.bf16.mxu0 0
    %2016 = vmatmul.mubr.bf16.gmra.mxu0 %v1889
    %v2017 = vpop.f32.mrf.mxu0
    %v2018 = vadd.f32 %v1821, %v2017
    %v2019 = vpop.f32.mrf.mxu0
    %v2020 = vpop.f32.mrf.mxu0
    %v2021 = vadd.f32 %v1821, %v2020
    %v2022 = vpop.f32.mrf.mxu0
    %2023 = vmatprep.mubr.bf16.mxu0 0
    %2024 = vmatmul.mubr.bf16.gmra.mxu0 %v1890
    %v2025 = vpop.f32.mrf.mxu0
    %v2026 = vadd.f32 %v1821, %v2025
    %v2027 = vpop.f32.mrf.mxu0
    %v2028 = vpop.f32.mrf.mxu0
    %v2029 = vadd.f32 %v1821, %v2028
    %v2030 = vpop.f32.mrf.mxu0
    %2031 = vmatprep.mubr.bf16.mxu0 0
    %2032 = vmatmul.mubr.bf16.gmra.mxu0 %v1891
    %v2033 = vpop.f32.mrf.mxu0
    %v2034 = vadd.f32 %v1821, %v2033
    %v2035 = vpop.f32.mrf.mxu0
    %v2036 = vpop.f32.mrf.mxu0
    %v2037 = vadd.f32 %v1821, %v2036
    %v2038 = vpop.f32.mrf.mxu0
    %2039 = vmatprep.mubr.bf16.mxu0 0
    %2040 = vmatmul.mubr.bf16.gmra.mxu0 %v1892
    %v2041 = vpop.f32.mrf.mxu0
    %v2042 = vadd.f32 %v1821, %v2041
    %v2043 = vpop.f32.mrf.mxu0
    %v2044 = vpop.f32.mrf.mxu0
    %v2045 = vadd.f32 %v1821, %v2044
    %v2046 = vpop.f32.mrf.mxu0
    %2047 = vmatprep.mubr.bf16.mxu0 0
    %2048 = vmatmul.mubr.bf16.gmra.mxu0 %v1893
    %v2049 = vpop.f32.mrf.mxu0
    %v2050 = vadd.f32 %v1821, %v2049
    %v2051 = vpop.f32.mrf.mxu0
    %v2052 = vpop.f32.mrf.mxu0
    %v2053 = vadd.f32 %v1821, %v2052
    %v2054 = vpop.f32.mrf.mxu0
    %2055 = vmatprep.mubr.bf16.mxu0 0
    %2056 = vmatmul.mubr.bf16.gmra.mxu0 %v1894
    %v2057 = vpop.f32.mrf.mxu0
    %v2058 = vadd.f32 %v1821, %v2057
    %v2059 = vpop.f32.mrf.mxu0
    %v2060 = vpop.f32.mrf.mxu0
    %v2061 = vadd.f32 %v1821, %v2060
    %v2062 = vpop.f32.mrf.mxu0
    %2063 = vmatprep.mubr.bf16.mxu0 0
    %2064 = vmatmul.mubr.bf16.gmra.mxu0 %v1895
    %v2065 = vpop.f32.mrf.mxu0
    %v2066 = vadd.f32 %v1821, %v2065
    %v2067 = vpop.f32.mrf.mxu0
    %v2068 = vpop.f32.mrf.mxu0
    %v2069 = vadd.f32 %v1821, %v2068
    %v2070 = vpop.f32.mrf.mxu0
    %2071 = vmatprep.mubr.bf16.mxu0 0
    %2072 = vmatmul.mubr.bf16.gmra.mxu0 %v1896
    %v2073 = vpop.f32.mrf.mxu0
    %v2074 = vadd.f32 %v1821, %v2073
    %v2075 = vpop.f32.mrf.mxu0
    %v2076 = vpop.f32.mrf.mxu0
    %v2077 = vadd.f32 %v1821, %v2076
    %v2078 = vpop.f32.mrf.mxu0
    %2079 = vmatprep.mubr.bf16.mxu0 0
    %2080 = vmatmul.mubr.bf16.gmra.mxu0 %v1897
    %v2081 = vpop.f32.mrf.mxu0
    %v2082 = vadd.f32 %v1821, %v2081
    %v2083 = vpop.f32.mrf.mxu0
    %v2084 = vpop.f32.mrf.mxu0
    %v2085 = vadd.f32 %v1821, %v2084
    %v2086 = vpop.f32.mrf.mxu0
    %2087 = vmatprep.mubr.bf16.mxu0 0
    %2088 = vmatmul.mubr.bf16.gmra.mxu0 %v1898
    %v2089 = vpop.f32.mrf.mxu0
    %v2090 = vadd.f32 %v1821, %v2089
    %v2091 = vpop.f32.mrf.mxu0
    %v2092 = vpop.f32.mrf.mxu0
    %v2093 = vadd.f32 %v1821, %v2092
    %v2094 = vpop.f32.mrf.mxu0
    %2095 = vmatprep.mubr.bf16.mxu0 0
    %2096 = vmatmul.mubr.bf16.gmra.mxu0 %v1899
    %v2097 = vpop.f32.mrf.mxu0
    %v2098 = vadd.f32 %v1821, %v2097
    %v2099 = vpop.f32.mrf.mxu0
    %v2100 = vpop.f32.mrf.mxu0
    %v2101 = vadd.f32 %v1821, %v2100
    %v2102 = vpop.f32.mrf.mxu0
    %2103 = vmatprep.mubr.bf16.mxu0 0
    %2104 = vmatmul.mubr.bf16.gmra.mxu0 %v1900
    %v2105 = vpop.f32.mrf.mxu0
    %v2106 = vadd.f32 %v1821, %v2105
    %v2107 = vpop.f32.mrf.mxu0
    %v2108 = vpop.f32.mrf.mxu0
    %v2109 = vadd.f32 %v1821, %v2108
    %v2110 = vpop.f32.mrf.mxu0
    %2111 = vmatprep.mubr.bf16.mxu0 0
    %2112 = vmatmul.mubr.bf16.gmra.mxu0 %v1901
    %v2113 = vpop.f32.mrf.mxu0
    %v2114 = vadd.f32 %v1821, %v2113
    %v2115 = vpop.f32.mrf.mxu0
    %v2116 = vpop.f32.mrf.mxu0
    %v2117 = vadd.f32 %v1821, %v2116
    %v2118 = vpop.f32.mrf.mxu0
    %2119 = vmatprep.mubr.bf16.mxu0 0
    %2120 = vmatmul.mubr.bf16.gmra.mxu0 %v1902
    %v2121 = vpop.f32.mrf.mxu0
    %v2122 = vadd.f32 %v1821, %v2121
    %v2123 = vpop.f32.mrf.mxu0
    %v2124 = vpop.f32.mrf.mxu0
    %v2125 = vadd.f32 %v1821, %v2124
    %v2126 = vpop.f32.mrf.mxu0
    %2127 = vdwg.mxu0
    %v2128 = vxor.u32 %v2002, 2147483648
    %v2129 = vxor.u32 %v2005, 2147483648
    %v2130 = vxor.u32 %v2010, 2147483648
    %v2131 = vxor.u32 %v2013, 2147483648
    %v2132 = vxor.u32 %v2018, 2147483648
    %v2133 = vxor.u32 %v2021, 2147483648
    %v2134 = vxor.u32 %v2026, 2147483648
    %v2135 = vxor.u32 %v2029, 2147483648
    %v2136 = vxor.u32 %v2034, 2147483648
    %v2137 = vxor.u32 %v2037, 2147483648
    %v2138 = vxor.u32 %v2042, 2147483648
    %v2139 = vxor.u32 %v2045, 2147483648
    %v2140 = vxor.u32 %v2050, 2147483648
    %v2141 = vxor.u32 %v2053, 2147483648
    %v2142 = vxor.u32 %v2058, 2147483648
    %v2143 = vxor.u32 %v2061, 2147483648
    %v2144 = vxor.u32 %v2066, 2147483648
    %v2145 = vxor.u32 %v2069, 2147483648
    %v2146 = vxor.u32 %v2074, 2147483648
    %v2147 = vxor.u32 %v2077, 2147483648
    %v2148 = vxor.u32 %v2082, 2147483648
    %v2149 = vxor.u32 %v2085, 2147483648
    %v2150 = vxor.u32 %v2090, 2147483648
    %v2151 = vxor.u32 %v2093, 2147483648
    %v2152 = vxor.u32 %v2098, 2147483648
    %v2153 = vxor.u32 %v2101, 2147483648
    %v2154 = vxor.u32 %v2106, 2147483648
    %v2155 = vxor.u32 %v2109, 2147483648
    %v2156 = vxor.u32 %v2114, 2147483648
    %v2157 = vxor.u32 %v2117, 2147483648
    %v2158 = vxor.u32 %v2122, 2147483648
    %v2159 = vxor.u32 %v2125, 2147483648
    %v2160 = vmul.f32 %v2128, 1.442695
    %v2161 = vpow.pop %v2160
    %v2162 = vmul.f32 %v2129, 1.442695
    %v2163 = vpow.pop %v2162
    %v2164 = vmul.f32 %v2130, 1.442695
    %v2165 = vpow.pop %v2164
    %v2166 = vmul.f32 %v2131, 1.442695
    %v2167 = vpow.pop %v2166
    %v2168 = vmul.f32 %v2132, 1.442695
    %v2169 = vpow.pop %v2168
    %v2170 = vmul.f32 %v2133, 1.442695
    %v2171 = vpow.pop %v2170
    %v2172 = vmul.f32 %v2134, 1.442695
    %v2173 = vpow.pop %v2172
    %v2174 = vmul.f32 %v2135, 1.442695
    %v2175 = vpow.pop %v2174
    %v2176 = vmul.f32 %v2136, 1.442695
    %v2177 = vpow.pop %v2176
    %v2178 = vmul.f32 %v2137, 1.442695
    %v2179 = vpow.pop %v2178
    %v2180 = vmul.f32 %v2138, 1.442695
    %v2181 = vpow.pop %v2180
    %v2182 = vmul.f32 %v2139, 1.442695
    %v2183 = vpow.pop %v2182
    %v2184 = vmul.f32 %v2140, 1.442695
    %v2185 = vpow.pop %v2184
    %v2186 = vmul.f32 %v2141, 1.442695
    %v2187 = vpow.pop %v2186
    %v2188 = vmul.f32 %v2142, 1.442695
    %v2189 = vpow.pop %v2188
    %v2190 = vmul.f32 %v2143, 1.442695
    %v2191 = vpow.pop %v2190
    %v2192 = vmul.f32 %v2144, 1.442695
    %v2193 = vpow.pop %v2192
    %v2194 = vmul.f32 %v2145, 1.442695
    %v2195 = vpow.pop %v2194
    %v2196 = vmul.f32 %v2146, 1.442695
    %v2197 = vpow.pop %v2196
    %v2198 = vmul.f32 %v2147, 1.442695
    %v2199 = vpow.pop %v2198
    %v2200 = vmul.f32 %v2148, 1.442695
    %v2201 = vpow.pop %v2200
    %v2202 = vmul.f32 %v2149, 1.442695
    %v2203 = vpow.pop %v2202
    %v2204 = vmul.f32 %v2150, 1.442695
    %v2205 = vpow.pop %v2204
    %v2206 = vmul.f32 %v2151, 1.442695
    %v2207 = vpow.pop %v2206
    %v2208 = vmul.f32 %v2152, 1.442695
    %v2209 = vpow.pop %v2208
    %v2210 = vmul.f32 %v2153, 1.442695
    %v2211 = vpow.pop %v2210
    %v2212 = vmul.f32 %v2154, 1.442695
    %v2213 = vpow.pop %v2212
    %v2214 = vmul.f32 %v2155, 1.442695
    %v2215 = vpow.pop %v2214
    %v2216 = vmul.f32 %v2156, 1.442695
    %v2217 = vpow.pop %v2216
    %v2218 = vmul.f32 %v2157, 1.442695
    %v2219 = vpow.pop %v2218
    %v2220 = vmul.f32 %v2158, 1.442695
    %v2221 = vpow.pop %v2220
    %v2222 = vmul.f32 %v2159, 1.442695
    %v2223 = vpow.pop %v2222
    %v2224 = vadd.f32 %v2161, 1.0
    %v2225 = vadd.f32 %v2163, 1.0
    %v2226 = vadd.f32 %v2165, 1.0
    %v2227 = vadd.f32 %v2167, 1.0
    %v2228 = vadd.f32 %v2169, 1.0
    %v2229 = vadd.f32 %v2171, 1.0
    %v2230 = vadd.f32 %v2173, 1.0
    %v2231 = vadd.f32 %v2175, 1.0
    %v2232 = vadd.f32 %v2177, 1.0
    %v2233 = vadd.f32 %v2179, 1.0
    %v2234 = vadd.f32 %v2181, 1.0
    %v2235 = vadd.f32 %v2183, 1.0
    %v2236 = vadd.f32 %v2185, 1.0
    %v2237 = vadd.f32 %v2187, 1.0
    %v2238 = vadd.f32 %v2189, 1.0
    %v2239 = vadd.f32 %v2191, 1.0
    %v2240 = vadd.f32 %v2193, 1.0
    %v2241 = vadd.f32 %v2195, 1.0
    %v2242 = vadd.f32 %v2197, 1.0
    %v2243 = vadd.f32 %v2199, 1.0
    %v2244 = vadd.f32 %v2201, 1.0
    %v2245 = vadd.f32 %v2203, 1.0
    %v2246 = vadd.f32 %v2205, 1.0
    %v2247 = vadd.f32 %v2207, 1.0
    %v2248 = vadd.f32 %v2209, 1.0
    %v2249 = vadd.f32 %v2211, 1.0
    %v2250 = vadd.f32 %v2213, 1.0
    %v2251 = vadd.f32 %v2215, 1.0
    %v2252 = vadd.f32 %v2217, 1.0
    %v2253 = vadd.f32 %v2219, 1.0
    %v2254 = vadd.f32 %v2221, 1.0
    %v2255 = vadd.f32 %v2223, 1.0
    %v2256 = vrcp.pop %v2224
    %v2257 = vmul.f32 1.0, %v2256
    %v2258 = vrcp.pop %v2225
    %v2259 = vmul.f32 1.0, %v2258
    %v2260 = vrcp.pop %v2226
    %v2261 = vmul.f32 1.0, %v2260
    %v2262 = vrcp.pop %v2227
    %v2263 = vmul.f32 1.0, %v2262
    %v2264 = vrcp.pop %v2228
    %v2265 = vmul.f32 1.0, %v2264
    %v2266 = vrcp.pop %v2229
    %v2267 = vmul.f32 1.0, %v2266
    %v2268 = vrcp.pop %v2230
    %v2269 = vmul.f32 1.0, %v2268
    %v2270 = vrcp.pop %v2231
    %v2271 = vmul.f32 1.0, %v2270
    %v2272 = vrcp.pop %v2232
    %v2273 = vmul.f32 1.0, %v2272
    %v2274 = vrcp.pop %v2233
    %v2275 = vmul.f32 1.0, %v2274
    %v2276 = vrcp.pop %v2234
    %v2277 = vmul.f32 1.0, %v2276
    %v2278 = vrcp.pop %v2235
    %v2279 = vmul.f32 1.0, %v2278
    %v2280 = vrcp.pop %v2236
    %v2281 = vmul.f32 1.0, %v2280
    %v2282 = vrcp.pop %v2237
    %v2283 = vmul.f32 1.0, %v2282
    %v2284 = vrcp.pop %v2238
    %v2285 = vmul.f32 1.0, %v2284
    %v2286 = vrcp.pop %v2239
    %v2287 = vmul.f32 1.0, %v2286
    %v2288 = vrcp.pop %v2240
    %v2289 = vmul.f32 1.0, %v2288
    %v2290 = vrcp.pop %v2241
    %v2291 = vmul.f32 1.0, %v2290
    %v2292 = vrcp.pop %v2242
    %v2293 = vmul.f32 1.0, %v2292
    %v2294 = vrcp.pop %v2243
    %v2295 = vmul.f32 1.0, %v2294
    %v2296 = vrcp.pop %v2244
    %v2297 = vmul.f32 1.0, %v2296
    %v2298 = vrcp.pop %v2245
    %v2299 = vmul.f32 1.0, %v2298
    %v2300 = vrcp.pop %v2246
    %v2301 = vmul.f32 1.0, %v2300
    %v2302 = vrcp.pop %v2247
    %v2303 = vmul.f32 1.0, %v2302
    %v2304 = vrcp.pop %v2248
    %v2305 = vmul.f32 1.0, %v2304
    %v2306 = vrcp.pop %v2249
    %v2307 = vmul.f32 1.0, %v2306
    %v2308 = vrcp.pop %v2250
    %v2309 = vmul.f32 1.0, %v2308
    %v2310 = vrcp.pop %v2251
    %v2311 = vmul.f32 1.0, %v2310
    %v2312 = vrcp.pop %v2252
    %v2313 = vmul.f32 1.0, %v2312
    %v2314 = vrcp.pop %v2253
    %v2315 = vmul.f32 1.0, %v2314
    %v2316 = vrcp.pop %v2254
    %v2317 = vmul.f32 1.0, %v2316
    %v2318 = vrcp.pop %v2255
    %v2319 = vmul.f32 1.0, %v2318
    %v2320 = vadd.f32 %v1223, %v1610
    %v2321 = vadd.f32 %v1224, %v1613
    %v2322 = vadd.f32 %v1225, %v1618
    %v2323 = vadd.f32 %v1226, %v1621
    %v2324 = vadd.f32 %v1227, %v1626
    %v2325 = vadd.f32 %v1228, %v1629
    %v2326 = vadd.f32 %v1229, %v1634
    %v2327 = vadd.f32 %v1230, %v1637
    %v2328 = vadd.f32 %v1231, %v1642
    %v2329 = vadd.f32 %v1232, %v1645
    %v2330 = vadd.f32 %v1233, %v1650
    %v2331 = vadd.f32 %v1234, %v1653
    %v2332 = vadd.f32 %v1235, %v1658
    %v2333 = vadd.f32 %v1236, %v1661
    %v2334 = vadd.f32 %v1237, %v1666
    %v2335 = vadd.f32 %v1238, %v1669
    %v2336 = vadd.f32 %v1239, %v1674
    %v2337 = vadd.f32 %v1240, %v1677
    %v2338 = vadd.f32 %v1241, %v1682
    %v2339 = vadd.f32 %v1242, %v1685
    %v2340 = vadd.f32 %v1243, %v1690
    %v2341 = vadd.f32 %v1244, %v1693
    %v2342 = vadd.f32 %v1245, %v1698
    %v2343 = vadd.f32 %v1246, %v1701
    %v2344 = vadd.f32 %v1247, %v1706
    %v2345 = vadd.f32 %v1248, %v1709
    %v2346 = vadd.f32 %v1249, %v1714
    %v2347 = vadd.f32 %v1250, %v1717
    %v2348 = vadd.f32 %v1251, %v1722
    %v2349 = vadd.f32 %v1252, %v1725
    %v2350 = vadd.f32 %v1253, %v1730
    %v2351 = vadd.f32 %v1254, %v1733
    %v2352 = vmul.f32 %v2257, %v2320
    %v2353 = vmul.f32 %v2259, %v2321
    %v2354 = vmul.f32 %v2261, %v2322
    %v2355 = vmul.f32 %v2263, %v2323
    %v2356 = vmul.f32 %v2265, %v2324
    %v2357 = vmul.f32 %v2267, %v2325
    %v2358 = vmul.f32 %v2269, %v2326
    %v2359 = vmul.f32 %v2271, %v2327
    %v2360 = vmul.f32 %v2273, %v2328
    %v2361 = vmul.f32 %v2275, %v2329
    %v2362 = vmul.f32 %v2277, %v2330
    %v2363 = vmul.f32 %v2279, %v2331
    %v2364 = vmul.f32 %v2281, %v2332
    %v2365 = vmul.f32 %v2283, %v2333
    %v2366 = vmul.f32 %v2285, %v2334
    %v2367 = vmul.f32 %v2287, %v2335
    %v2368 = vmul.f32 %v2289, %v2336
    %v2369 = vmul.f32 %v2291, %v2337
    %v2370 = vmul.f32 %v2293, %v2338
    %v2371 = vmul.f32 %v2295, %v2339
    %v2372 = vmul.f32 %v2297, %v2340
    %v2373 = vmul.f32 %v2299, %v2341
    %v2374 = vmul.f32 %v2301, %v2342
    %v2375 = vmul.f32 %v2303, %v2343
    %v2376 = vmul.f32 %v2305, %v2344
    %v2377 = vmul.f32 %v2307, %v2345
    %v2378 = vmul.f32 %v2309, %v2346
    %v2379 = vmul.f32 %v2311, %v2347
    %v2380 = vmul.f32 %v2313, %v2348
    %v2381 = vmul.f32 %v2315, %v2349
    %v2382 = vmul.f32 %v2317, %v2350
    %v2383 = vmul.f32 %v2319, %v2351
    %v2384 = vsub.f32 1.0, %v2257
    %v2385 = vsub.f32 1.0, %v2259
    %v2386 = vsub.f32 1.0, %v2261
    %v2387 = vsub.f32 1.0, %v2263
    %v2388 = vsub.f32 1.0, %v2265
    %v2389 = vsub.f32 1.0, %v2267
    %v2390 = vsub.f32 1.0, %v2269
    %v2391 = vsub.f32 1.0, %v2271
    %v2392 = vsub.f32 1.0, %v2273
    %v2393 = vsub.f32 1.0, %v2275
    %v2394 = vsub.f32 1.0, %v2277
    %v2395 = vsub.f32 1.0, %v2279
    %v2396 = vsub.f32 1.0, %v2281
    %v2397 = vsub.f32 1.0, %v2283
    %v2398 = vsub.f32 1.0, %v2285
    %v2399 = vsub.f32 1.0, %v2287
    %v2400 = vsub.f32 1.0, %v2289
    %v2401 = vsub.f32 1.0, %v2291
    %v2402 = vsub.f32 1.0, %v2293
    %v2403 = vsub.f32 1.0, %v2295
    %v2404 = vsub.f32 1.0, %v2297
    %v2405 = vsub.f32 1.0, %v2299
    %v2406 = vsub.f32 1.0, %v2301
    %v2407 = vsub.f32 1.0, %v2303
    %v2408 = vsub.f32 1.0, %v2305
    %v2409 = vsub.f32 1.0, %v2307
    %v2410 = vsub.f32 1.0, %v2309
    %v2411 = vsub.f32 1.0, %v2311
    %v2412 = vsub.f32 1.0, %v2313
    %v2413 = vsub.f32 1.0, %v2315
    %v2414 = vsub.f32 1.0, %v2317
    %v2415 = vsub.f32 1.0, %v2319
    %v2416 = vmul.f32 %v2384, %v1768
    %v2417 = vmul.f32 %v2385, %v1769
    %v2418 = vmul.f32 %v2386, %v1770
    %v2419 = vmul.f32 %v2387, %v1771
    %v2420 = vmul.f32 %v2388, %v1772
    %v2421 = vmul.f32 %v2389, %v1773
    %v2422 = vmul.f32 %v2390, %v1774
    %v2423 = vmul.f32 %v2391, %v1775
    %v2424 = vmul.f32 %v2392, %v1776
    %v2425 = vmul.f32 %v2393, %v1777
    %v2426 = vmul.f32 %v2394, %v1778
    %v2427 = vmul.f32 %v2395, %v1779
    %v2428 = vmul.f32 %v2396, %v1780
    %v2429 = vmul.f32 %v2397, %v1781
    %v2430 = vmul.f32 %v2398, %v1782
    %v2431 = vmul.f32 %v2399, %v1783
    %v2432 = vmul.f32 %v2400, %v1784
    %v2433 = vmul.f32 %v2401, %v1785
    %v2434 = vmul.f32 %v2402, %v1786
    %v2435 = vmul.f32 %v2403, %v1787
    %v2436 = vmul.f32 %v2404, %v1788
    %v2437 = vmul.f32 %v2405, %v1789
    %v2438 = vmul.f32 %v2406, %v1790
    %v2439 = vmul.f32 %v2407, %v1791
    %v2440 = vmul.f32 %v2408, %v1792
    %v2441 = vmul.f32 %v2409, %v1793
    %v2442 = vmul.f32 %v2410, %v1794
    %v2443 = vmul.f32 %v2411, %v1795
    %v2444 = vmul.f32 %v2412, %v1796
    %v2445 = vmul.f32 %v2413, %v1797
    %v2446 = vmul.f32 %v2414, %v1798
    %v2447 = vmul.f32 %v2415, %v1799
    %v2448 = vadd.f32 %v2352, %v2416
    %v2449 = vadd.f32 %v2353, %v2417
    %v2450 = vadd.f32 %v2354, %v2418
    %v2451 = vadd.f32 %v2355, %v2419
    %v2452 = vadd.f32 %v2356, %v2420
    %v2453 = vadd.f32 %v2357, %v2421
    %v2454 = vadd.f32 %v2358, %v2422
    %v2455 = vadd.f32 %v2359, %v2423
    %v2456 = vadd.f32 %v2360, %v2424
    %v2457 = vadd.f32 %v2361, %v2425
    %v2458 = vadd.f32 %v2362, %v2426
    %v2459 = vadd.f32 %v2363, %v2427
    %v2460 = vadd.f32 %v2364, %v2428
    %v2461 = vadd.f32 %v2365, %v2429
    %v2462 = vadd.f32 %v2366, %v2430
    %v2463 = vadd.f32 %v2367, %v2431
    %v2464 = vadd.f32 %v2368, %v2432
    %v2465 = vadd.f32 %v2369, %v2433
    %v2466 = vadd.f32 %v2370, %v2434
    %v2467 = vadd.f32 %v2371, %v2435
    %v2468 = vadd.f32 %v2372, %v2436
    %v2469 = vadd.f32 %v2373, %v2437
    %v2470 = vadd.f32 %v2374, %v2438
    %v2471 = vadd.f32 %v2375, %v2439
    %v2472 = vadd.f32 %v2376, %v2440
    %v2473 = vadd.f32 %v2377, %v2441
    %v2474 = vadd.f32 %v2378, %v2442
    %v2475 = vadd.f32 %v2379, %v2443
    %v2476 = vadd.f32 %v2380, %v2444
    %v2477 = vadd.f32 %v2381, %v2445
    %v2478 = vadd.f32 %v2382, %v2446
    %v2479 = vadd.f32 %v2383, %v2447
    %v2480 = vmax.f32 %v2448, 0.0
    %v2481 = vmax.f32 %v2449, 0.0
    %v2482 = vmax.f32 %v2450, 0.0
    %v2483 = vmax.f32 %v2451, 0.0
    %v2484 = vmax.f32 %v2452, 0.0
    %v2485 = vmax.f32 %v2453, 0.0
    %v2486 = vmax.f32 %v2454, 0.0
    %v2487 = vmax.f32 %v2455, 0.0
    %v2488 = vmax.f32 %v2456, 0.0
    %v2489 = vmax.f32 %v2457, 0.0
    %v2490 = vmax.f32 %v2458, 0.0
    %v2491 = vmax.f32 %v2459, 0.0
    %v2492 = vmax.f32 %v2460, 0.0
    %v2493 = vmax.f32 %v2461, 0.0
    %v2494 = vmax.f32 %v2462, 0.0
    %v2495 = vmax.f32 %v2463, 0.0
    %v2496 = vmax.f32 %v2464, 0.0
    %v2497 = vmax.f32 %v2465, 0.0
    %v2498 = vmax.f32 %v2466, 0.0
    %v2499 = vmax.f32 %v2467, 0.0
    %v2500 = vmax.f32 %v2468, 0.0
    %v2501 = vmax.f32 %v2469, 0.0
    %v2502 = vmax.f32 %v2470, 0.0
    %v2503 = vmax.f32 %v2471, 0.0
    %v2504 = vmax.f32 %v2472, 0.0
    %v2505 = vmax.f32 %v2473, 0.0
    %v2506 = vmax.f32 %v2474, 0.0
    %v2507 = vmax.f32 %v2475, 0.0
    %v2508 = vmax.f32 %v2476, 0.0
    %v2509 = vmax.f32 %v2477, 0.0
    %v2510 = vmax.f32 %v2478, 0.0
    %v2511 = vmax.f32 %v2479, 0.0
    %2512 = vst [vmem:[%s8] sm:$0xff] %v2480
    %2513 = vst [vmem:[%s8 + $0x8] sm:$0xff] %v2481
    %2514 = vst [vmem:[%s8 + $0x10] sm:$0xff] %v2482
    %2515 = vst [vmem:[%s8 + $0x18] sm:$0xff] %v2483
    %2516 = vst [vmem:[%s8 + $0x20] sm:$0xff] %v2484
    %2517 = vst [vmem:[%s8 + $0x28] sm:$0xff] %v2485
    %2518 = vst [vmem:[%s8 + $0x30] sm:$0xff] %v2486
    %2519 = vst [vmem:[%s8 + $0x38] sm:$0xff] %v2487
    %2520 = vst [vmem:[%s8 + $0x40] sm:$0xff] %v2488
    %2521 = vst [vmem:[%s8 + $0x48] sm:$0xff] %v2489
    %2522 = vst [vmem:[%s8 + $0x50] sm:$0xff] %v2490
    %2523 = vst [vmem:[%s8 + $0x58] sm:$0xff] %v2491
    %2524 = vst [vmem:[%s8 + $0x60] sm:$0xff] %v2492
    %2525 = vst [vmem:[%s8 + $0x68] sm:$0xff] %v2493
    %2526 = vst [vmem:[%s8 + $0x70] sm:$0xff] %v2494
    %2527 = vst [vmem:[%s8 + $0x78] sm:$0xff] %v2495
    %2528 = vst [vmem:[%s8 + $0x80] sm:$0xff] %v2496
    %2529 = vst [vmem:[%s8 + $0x88] sm:$0xff] %v2497
    %2530 = vst [vmem:[%s8 + $0x90] sm:$0xff] %v2498
    %2531 = vst [vmem:[%s8 + $0x98] sm:$0xff] %v2499
    %2532 = vst [vmem:[%s8 + $0xa0] sm:$0xff] %v2500
    %2533 = vst [vmem:[%s8 + $0xa8] sm:$0xff] %v2501
    %2534 = vst [vmem:[%s8 + $0xb0] sm:$0xff] %v2502
    %2535 = vst [vmem:[%s8 + $0xb8] sm:$0xff] %v2503
    %2536 = vst [vmem:[%s8 + $0xc0] sm:$0xff] %v2504
    %2537 = vst [vmem:[%s8 + $0xc8] sm:$0xff] %v2505
    %2538 = vst [vmem:[%s8 + $0xd0] sm:$0xff] %v2506
    %2539 = vst [vmem:[%s8 + $0xd8] sm:$0xff] %v2507
    %2540 = vst [vmem:[%s8 + $0xe0] sm:$0xff] %v2508
    %2541 = vst [vmem:[%s8 + $0xe8] sm:$0xff] %v2509
    %2542 = vst [vmem:[%s8 + $0xf0] sm:$0xff] %v2510
    %2543 = vst [vmem:[%s8 + $0xf8] sm:$0xff] %v2511
  $region41: #{union_rgcn_forward.1} parent=0 // pred_fallthru
    _
  // Predicated region
  $region42: #{union_rgcn_forward.1} parent=0 // pred_check
    _
  $region43: #{union_rgcn_forward.1} parent=0 // pred_check_branch
    %2545 = sbr.rel (0) target = $region45
  $region44: #{union_rgcn_forward.1} parent=0 // pred_region
    _
  $region45: #{union_rgcn_forward.1} parent=0 // pred_fallthru
    _
  // Predicated region
  $region46: #{union_rgcn_forward.1} parent=0 // pred_check
    _
  $region47: #{union_rgcn_forward.1} parent=0 // pred_check_branch
    %2547 = sbr.rel (0) target = $region49
  $region48: #{union_rgcn_forward.1} parent=0 // pred_region
    _
  $region49: #{union_rgcn_forward.1} parent=0 // pred_fallthru
    _

</llo_original>
